<compile_context>
chip_gen: v7x
topology: tpu7x:2x2x1
jax: 0.10.0
libtpu: 0.0.40
codegen_flags: <defaults>
</compile_context>

<pallas_src>
import jax
import jax.numpy as jnp
from jax.experimental import pallas as pl
from jax.experimental.pallas import tpu as pltpu

B = 2
C, H_IMG, W_IMG = 4, 16, 16
D_IN = C * H_IMG * W_IMG      # 1024
HID = 128
Z_DIM = 32                    # encoder last Linear out_features = 2 * Z_DIM = 64
Z_PAD = 128                   # each latent head padded to a full 128-lane vreg
HEAD = 2 * Z_PAD              # fused mu|logvar head: 256 lanes fills v6e/v7x MXU
TM_MAX = 256                  # batch tile for real batches (>=128 v5e, 256 v6e/v7x)


def bvae_fwd_kernel(x_ref, ew1_ref, eb1_ref, ew2_ref, eb2_ref,
                    dw1_ref, db1_ref, dw2_ref, db2_ref, eps_ref,
                    xrec_ref, mu_ref, logvar_ref):
    # x streamed as bf16 (pre-cast in the wrapper); accumulation stays f32.
    x = x_ref[...]                                            # (TM, D_IN), bf16

    # --- encoder: Linear -> ReLU ---
    h = jnp.dot(x, ew1_ref[...], preferred_element_type=jnp.float32) + eb1_ref[...]
    h = jnp.maximum(h, 0.0)                                   # (TM, HID), f32
    h_bf = h.astype(jnp.bfloat16)

    # --- fused encoder head: one (HID, 256) matmul; split at the 128-lane
    #     vreg boundary (free, no masked ops). Padded lanes are exactly 0
    #     because pack_params zero-pads the head weights/biases.
    dist = jnp.dot(h_bf, ew2_ref[...], preferred_element_type=jnp.float32) + eb2_ref[...]
    mu = dist[:, :Z_PAD]                                      # (TM, Z_PAD)
    logvar = dist[:, Z_PAD:]                                  # (TM, Z_PAD)

    # --- reparametrize: z = mu + exp(logvar/2) * eps ---
    # Padded lanes: logvar=0 -> std=1, eps=0 -> z=mu=0; dw1 rows >= Z_DIM are 0,
    # so the padding never leaks into the decoder.
    std = jnp.exp(logvar * 0.5)
    z = mu + std * eps_ref[...]                               # (TM, Z_PAD)

    # --- decoder: Linear -> ReLU -> Linear ---
    hd = jnp.dot(z.astype(jnp.bfloat16), dw1_ref[...],
                 preferred_element_type=jnp.float32) + db1_ref[...]
    hd = jnp.maximum(hd, 0.0)                                 # (TM, HID), f32
    xrec = jnp.dot(hd.astype(jnp.bfloat16), dw2_ref[...],
                   preferred_element_type=jnp.float32) + db2_ref[...]

    xrec_ref[...] = xrec.astype(xrec_ref.dtype)               # bf16 writeback
    mu_ref[...] = mu
    logvar_ref[...] = logvar


def _resident(shape):
    # Whole array, constant block index -> fetched once, stays resident in VMEM
    # across all batch-tile grid steps.
    return pl.BlockSpec(shape, lambda i: (0,) * len(shape))


def beta_vae_forward(x_nchw, packed_params, eps):
    """Fused BetaVAE forward. Returns (x_recon, mu, logvar) at logical shapes."""
    (ew1, eb1, ew2, eb2, dw1, db1, dw2, db2) = packed_params

    b = x_nchw.shape[0]
    x_flat = x_nchw.reshape(b, -1).astype(jnp.bfloat16)       # Flatten + bf16 stream

    # Adaptive batch tile: one tile for small batches, TM_MAX tiles otherwise.
    if b <= TM_MAX:
        tm = max(8, ((b + 7) // 8) * 8)
    else:
        tm = TM_MAX
    b_pad = ((b + tm - 1) // tm) * tm

    # Avoid zeros+scatter padding: only pad the ragged tail (if any).
    x_p = x_flat if b_pad == b else jnp.pad(x_flat, ((0, b_pad - b), (0, 0)))
    eps_p = jnp.pad(eps.astype(jnp.float32),
                    ((0, b_pad - b), (0, Z_PAD - Z_DIM)))     # lane-pad eps to 128

    grid = (b_pad // tm,)

    out_shapes = (
        jax.ShapeDtypeStruct((b_pad, D_IN), jnp.bfloat16),    # x_recon (bf16 stream)
        jax.ShapeDtypeStruct((b_pad, Z_PAD), jnp.float32),    # mu (padded lanes)
        jax.ShapeDtypeStruct((b_pad, Z_PAD), jnp.float32),    # logvar (padded lanes)
    )

    # NOTE: if xprof shows exposed DMA on the x/xrec streams at large TM (v5e),
    # add pipeline_mode=pl.Buffered(3) to those two BlockSpecs.
    xrec_p, mu_p, logvar_p = pl.pallas_call(
        bvae_fwd_kernel,
        grid=grid,
        in_specs=[
            pl.BlockSpec((tm, D_IN), lambda i: (i, 0)),       # x tile (bf16)
            _resident((D_IN, HID)),                           # ew1 (bf16)
            _resident((1, HID)),                              # eb1 (f32)
            _resident((HID, HEAD)),                           # fused ew2 mu|logvar (bf16)
            _resident((1, HEAD)),                             # fused eb2 (f32)
            _resident((Z_PAD, HID)),                          # dw1 (bf16, zero-padded rows)
            _resident((1, HID)),                              # db1 (f32)
            _resident((HID, D_IN)),                           # dw2 (bf16)
            _resident((1, D_IN)),                             # db2 (f32)
            pl.BlockSpec((tm, Z_PAD), lambda i: (i, 0)),      # eps tile (f32)
        ],
        out_specs=[
            pl.BlockSpec((tm, D_IN), lambda i: (i, 0)),
            pl.BlockSpec((tm, Z_PAD), lambda i: (i, 0)),
            pl.BlockSpec((tm, Z_PAD), lambda i: (i, 0)),
        ],
        out_shape=out_shapes,
        compiler_params=pltpu.CompilerParams(
            dimension_semantics=("parallel",)),               # megacore-shardable on v7x
    )(x_p, ew1, eb1, ew2, eb2, dw1, db1, dw2, db2, eps_p)

    return (xrec_p[:b].astype(jnp.float32),
            mu_p[:b, :Z_DIM],
            logvar_p[:b, :Z_DIM])


def _kaiming_normal(key, fan_in, fan_out):
    # He/Kaiming normal (fan_in mode, relu gain), matching kaiming_init intent.
    std = (2.0 / fan_in) ** 0.5
    return jax.random.normal(key, (fan_in, fan_out), dtype=jnp.float32) * std


def init_params(key):
    """Logical (PyTorch-layout) parameters in f32."""
    k1, k2, k3, k4 = jax.random.split(key, 4)
    ew1 = _kaiming_normal(k1, D_IN, HID)
    eb1 = jnp.zeros((1, HID), jnp.float32)
    ew2 = _kaiming_normal(k2, HID, 2 * Z_DIM)
    eb2 = jnp.zeros((1, 2 * Z_DIM), jnp.float32)
    dw1 = _kaiming_normal(k3, Z_DIM, HID)
    db1 = jnp.zeros((1, HID), jnp.float32)
    dw2 = _kaiming_normal(k4, HID, D_IN)
    db2 = jnp.zeros((1, D_IN), jnp.float32)
    return (ew1, eb1, ew2, eb2, dw1, db1, dw2, db2)


def pack_params(logical):
    """Kernel layout: fused+lane-padded mu|logvar head, zero-padded dw1, bf16 weights."""
    ew1, eb1, ew2, eb2, dw1, db1, dw2, db2 = logical
    ew2_p = jnp.zeros((HID, HEAD), jnp.float32)
    ew2_p = ew2_p.at[:, :Z_DIM].set(ew2[:, :Z_DIM])                  # mu head -> lanes [0, Z_DIM)
    ew2_p = ew2_p.at[:, Z_PAD:Z_PAD + Z_DIM].set(ew2[:, Z_DIM:])     # logvar head -> lanes [128, 128+Z_DIM)
    eb2_p = jnp.zeros((1, HEAD), jnp.float32)
    eb2_p = eb2_p.at[:, :Z_DIM].set(eb2[:, :Z_DIM])
    eb2_p = eb2_p.at[:, Z_PAD:Z_PAD + Z_DIM].set(eb2[:, Z_DIM:])
    dw1_p = jnp.zeros((Z_PAD, HID), jnp.float32).at[:Z_DIM].set(dw1)
    return (ew1.astype(jnp.bfloat16), eb1,
            ew2_p.astype(jnp.bfloat16), eb2_p,
            dw1_p.astype(jnp.bfloat16), db1,
            dw2.astype(jnp.bfloat16), db2)


def reference_forward(x_nchw, packed_params, eps):
    """Plain-JAX reference that mirrors the kernel's numerics (bf16 MXU, f32 acc)."""
    (ew1, eb1, ew2, eb2, dw1, db1, dw2, db2) = packed_params
    xf = x_nchw.reshape(x_nchw.shape[0], -1).astype(jnp.bfloat16)
    h = jnp.maximum(jnp.dot(xf, ew1, preferred_element_type=jnp.float32) + eb1, 0.0)
    hb = h.astype(jnp.bfloat16)
    dist = jnp.dot(hb, ew2, preferred_element_type=jnp.float32) + eb2
    mu, lv = dist[:, :Z_PAD], dist[:, Z_PAD:]
    eps_p = jnp.pad(eps.astype(jnp.float32), ((0, 0), (0, Z_PAD - Z_DIM)))
    z = mu + jnp.exp(lv * 0.5) * eps_p
    hd = jnp.maximum(jnp.dot(z.astype(jnp.bfloat16), dw1,
                             preferred_element_type=jnp.float32) + db1, 0.0)
    xr = jnp.dot(hd.astype(jnp.bfloat16), dw2,
                 preferred_element_type=jnp.float32) + db2
    xr = xr.astype(jnp.bfloat16).astype(jnp.float32)          # match kernel's bf16 writeback
    return xr, mu[:, :Z_DIM], lv[:, :Z_DIM]


if __name__ == "__main__":
    key = jax.random.PRNGKey(0)
    kx, kparam, keps = jax.random.split(key, 3)

    x = jax.random.uniform(kx, (B, C, H_IMG, W_IMG), dtype=jnp.float32)  # NCHW like PyTorch
    params = pack_params(init_params(kparam))
    # Reparametrization noise (torch: std.data.new(...).normal_()), fixed for
    # determinism and passed in so the reference can reproduce the kernel exactly.
    # TODO(synk): could generate eps in-kernel with pltpu.prng_seed/stateful_normal
    # to drop one stream, but that breaks host-RNG reproducibility for validation.
    eps = jax.random.normal(keps, (B, Z_DIM), dtype=jnp.float32)

    x_recon, mu, logvar = beta_vae_forward(x, params, eps)
    jax.block_until_ready((x_recon, mu, logvar))

    # sanity: compare against a plain-JAX reference with matching bf16 numerics
    xrec_ref, mu_ref, logvar_ref = reference_forward(x, params, eps)
    assert x_recon.shape == (B, D_IN) and mu.shape == (B, Z_DIM) and logvar.shape == (B, Z_DIM)
    assert jnp.allclose(mu, mu_ref, atol=5e-3, rtol=5e-3)
    assert jnp.allclose(logvar, logvar_ref, atol=5e-3, rtol=5e-3)
    assert jnp.allclose(x_recon, xrec_ref, atol=2e-2, rtol=2e-2)

    # TODO(synk): training path (fit/_fit: Adam step, BCE/MSE + KL losses, backward)
    # is not part of the forward contract and is not translated.
    print("KERNEL_OK")
</pallas_src>

<mosaic_0001>
module attributes {stable_mosaic.version = 11 : i64} {
  func.func @bvae_fwd_kernel(%arg0: i32, %arg1: memref<8x1024xbf16, #tpu.memory_space<vmem>>, %arg2: memref<1024x128xbf16, #tpu.memory_space<vmem>>, %arg3: memref<1x128xf32, #tpu.memory_space<vmem>>, %arg4: memref<128x256xbf16, #tpu.memory_space<vmem>>, %arg5: memref<1x256xf32, #tpu.memory_space<vmem>>, %arg6: memref<128x128xbf16, #tpu.memory_space<vmem>>, %arg7: memref<1x128xf32, #tpu.memory_space<vmem>>, %arg8: memref<128x1024xbf16, #tpu.memory_space<vmem>>, %arg9: memref<1x1024xf32, #tpu.memory_space<vmem>>, %arg10: memref<8x128xf32, #tpu.memory_space<vmem>>, %arg11: memref<8x1024xbf16, #tpu.memory_space<vmem>>, %arg12: memref<8x128xf32, #tpu.memory_space<vmem>>, %arg13: memref<8x128xf32, #tpu.memory_space<vmem>>) attributes {dimension_semantics = [#tpu.dimension_semantics<parallel>], iteration_bounds = array<i64: 1>, scalar_prefetch = 0 : i64, scratch_operands = 0 : i64, tpu.core_type = #tpu.core_type<tc>, window_params = [{transform_indices = @transform_0, window_bounds = array<i64: 8, 1024>}, {pipeline_mode = #tpu.pipeline_mode<synchronous>, transform_indices = @transform_1, window_bounds = array<i64: 1024, 128>}, {pipeline_mode = #tpu.pipeline_mode<synchronous>, transform_indices = @transform_2, window_bounds = array<i64: 1, 128>}, {pipeline_mode = #tpu.pipeline_mode<synchronous>, transform_indices = @transform_3, window_bounds = array<i64: 128, 256>}, {pipeline_mode = #tpu.pipeline_mode<synchronous>, transform_indices = @transform_4, window_bounds = array<i64: 1, 256>}, {pipeline_mode = #tpu.pipeline_mode<synchronous>, transform_indices = @transform_5, window_bounds = array<i64: 128, 128>}, {pipeline_mode = #tpu.pipeline_mode<synchronous>, transform_indices = @transform_6, window_bounds = array<i64: 1, 128>}, {pipeline_mode = #tpu.pipeline_mode<synchronous>, transform_indices = @transform_7, window_bounds = array<i64: 128, 1024>}, {pipeline_mode = #tpu.pipeline_mode<synchronous>, transform_indices = @transform_8, window_bounds = array<i64: 1, 1024>}, {transform_indices = @transform_9, window_bounds = array<i64: 8, 128>}, {transform_indices = @transform_10, window_bounds = array<i64: 8, 1024>}, {transform_indices = @transform_11, window_bounds = array<i64: 8, 128>}, {transform_indices = @transform_12, window_bounds = array<i64: 8, 128>}]} {
    %c0 = arith.constant 0 : index
    %c0_0 = arith.constant 0 : index
    %0 = vector.load %arg1[%c0, %c0_0] : memref<8x1024xbf16, #tpu.memory_space<vmem>>, vector<8x1024xbf16>
    %c0_1 = arith.constant 0 : index
    %c0_2 = arith.constant 0 : index
    %1 = vector.load %arg2[%c0_1, %c0_2] : memref<1024x128xbf16, #tpu.memory_space<vmem>>, vector<1024x128xbf16>
    %cst = arith.constant dense<0.000000e+00> : vector<8x128xf32>
    %2 = tpu.matmul %0, %1, %cst {dimension_numbers = #tpu.dot_dimension_numbers<[1], [0], [0], [1], [0, 0, 1, 1], [], []>} : vector<8x1024xbf16>, vector<1024x128xbf16>, vector<8x128xf32> -> vector<8x128xf32>
    %c0_3 = arith.constant 0 : index
    %c0_4 = arith.constant 0 : index
    %3 = vector.load %arg3[%c0_3, %c0_4] : memref<1x128xf32, #tpu.memory_space<vmem>>, vector<1x128xf32>
    %4 = vector.broadcast %3 : vector<1x128xf32> to vector<8x128xf32>
    %5 = arith.addf %2, %4 : vector<8x128xf32>
    %cst_5 = arith.constant 0.000000e+00 : f32
    %6 = vector.broadcast %cst_5 : f32 to vector<8x128xf32>
    %7 = arith.maximumf %5, %6 : vector<8x128xf32>
    %8 = arith.truncf %7 : vector<8x128xf32> to vector<8x128xbf16>
    %c0_6 = arith.constant 0 : index
    %c0_7 = arith.constant 0 : index
    %9 = vector.load %arg4[%c0_6, %c0_7] : memref<128x256xbf16, #tpu.memory_space<vmem>>, vector<128x256xbf16>
    %cst_8 = arith.constant dense<0.000000e+00> : vector<8x256xf32>
    %10 = tpu.matmul %8, %9, %cst_8 {dimension_numbers = #tpu.dot_dimension_numbers<[1], [0], [0], [1], [0, 0, 1, 1], [], []>} : vector<8x128xbf16>, vector<128x256xbf16>, vector<8x256xf32> -> vector<8x256xf32>
    %c0_9 = arith.constant 0 : index
    %c0_10 = arith.constant 0 : index
    %11 = vector.load %arg5[%c0_9, %c0_10] : memref<1x256xf32, #tpu.memory_space<vmem>>, vector<1x256xf32>
    %12 = vector.broadcast %11 : vector<1x256xf32> to vector<8x256xf32>
    %13 = arith.addf %10, %12 : vector<8x256xf32>
    %14 = vector.extract_strided_slice %13 {offsets = [0, 0], sizes = [8, 128], strides = [1, 1]} : vector<8x256xf32> to vector<8x128xf32>
    %15 = vector.extract_strided_slice %13 {offsets = [0, 128], sizes = [8, 128], strides = [1, 1]} : vector<8x256xf32> to vector<8x128xf32>
    %cst_11 = arith.constant 5.000000e-01 : f32
    %16 = vector.broadcast %cst_11 : f32 to vector<8x128xf32>
    %17 = arith.mulf %15, %16 : vector<8x128xf32>
    %18 = math.exp %17 : vector<8x128xf32>
    %c0_12 = arith.constant 0 : index
    %c0_13 = arith.constant 0 : index
    %19 = vector.load %arg10[%c0_12, %c0_13] : memref<8x128xf32, #tpu.memory_space<vmem>>, vector<8x128xf32>
    %20 = arith.mulf %18, %19 : vector<8x128xf32>
    %21 = arith.addf %14, %20 : vector<8x128xf32>
    %22 = arith.truncf %21 : vector<8x128xf32> to vector<8x128xbf16>
    %c0_14 = arith.constant 0 : index
    %c0_15 = arith.constant 0 : index
    %23 = vector.load %arg6[%c0_14, %c0_15] : memref<128x128xbf16, #tpu.memory_space<vmem>>, vector<128x128xbf16>
    %cst_16 = arith.constant dense<0.000000e+00> : vector<8x128xf32>
    %24 = tpu.matmul %22, %23, %cst_16 {dimension_numbers = #tpu.dot_dimension_numbers<[1], [0], [0], [1], [0, 0, 1, 1], [], []>} : vector<8x128xbf16>, vector<128x128xbf16>, vector<8x128xf32> -> vector<8x128xf32>
    %c0_17 = arith.constant 0 : index
    %c0_18 = arith.constant 0 : index
    %25 = vector.load %arg7[%c0_17, %c0_18] : memref<1x128xf32, #tpu.memory_space<vmem>>, vector<1x128xf32>
    %26 = vector.broadcast %25 : vector<1x128xf32> to vector<8x128xf32>
    %27 = arith.addf %24, %26 : vector<8x128xf32>
    %cst_19 = arith.constant 0.000000e+00 : f32
    %28 = vector.broadcast %cst_19 : f32 to vector<8x128xf32>
    %29 = arith.maximumf %27, %28 : vector<8x128xf32>
    %30 = arith.truncf %29 : vector<8x128xf32> to vector<8x128xbf16>
    %c0_20 = arith.constant 0 : index
    %c0_21 = arith.constant 0 : index
    %31 = vector.load %arg8[%c0_20, %c0_21] : memref<128x1024xbf16, #tpu.memory_space<vmem>>, vector<128x1024xbf16>
    %cst_22 = arith.constant dense<0.000000e+00> : vector<8x1024xf32>
    %32 = tpu.matmul %30, %31, %cst_22 {dimension_numbers = #tpu.dot_dimension_numbers<[1], [0], [0], [1], [0, 0, 1, 1], [], []>} : vector<8x128xbf16>, vector<128x1024xbf16>, vector<8x1024xf32> -> vector<8x1024xf32>
    %c0_23 = arith.constant 0 : index
    %c0_24 = arith.constant 0 : index
    %33 = vector.load %arg9[%c0_23, %c0_24] : memref<1x1024xf32, #tpu.memory_space<vmem>>, vector<1x1024xf32>
    %34 = vector.broadcast %33 : vector<1x1024xf32> to vector<8x1024xf32>
    %35 = arith.addf %32, %34 : vector<8x1024xf32>
    %36 = arith.truncf %35 : vector<8x1024xf32> to vector<8x1024xbf16>
    %c0_25 = arith.constant 0 : index
    %c0_26 = arith.constant 0 : index
    %37 = vector.load %arg11[%c0_25, %c0_26] : memref<8x1024xbf16, #tpu.memory_space<vmem>>, vector<8x1024xbf16>
    tpu.vector_store %arg11[%c0_25, %c0_26], %36 {strides = array<i32>} : memref<8x1024xbf16, #tpu.memory_space<vmem>>, vector<8x1024xbf16>,
    %c0_27 = arith.constant 0 : index
    %c0_28 = arith.constant 0 : index
    %38 = vector.load %arg12[%c0_27, %c0_28] : memref<8x128xf32, #tpu.memory_space<vmem>>, vector<8x128xf32>
    tpu.vector_store %arg12[%c0_27, %c0_28], %14 {strides = array<i32>} : memref<8x128xf32, #tpu.memory_space<vmem>>, vector<8x128xf32>,
    %c0_29 = arith.constant 0 : index
    %c0_30 = arith.constant 0 : index
    %39 = vector.load %arg13[%c0_29, %c0_30] : memref<8x128xf32, #tpu.memory_space<vmem>>, vector<8x128xf32>
    tpu.vector_store %arg13[%c0_29, %c0_30], %15 {strides = array<i32>} : memref<8x128xf32, #tpu.memory_space<vmem>>, vector<8x128xf32>,
    return
  }
  func.func @transform_0(%arg0: i32) -> (i32, i32) {
    %c0_i32 = arith.constant 0 : i32
    %c0_i32_0 = arith.constant 0 : i32
    return %arg0, %c0_i32 : i32, i32
  }
  func.func @transform_1(%arg0: i32) -> (i32, i32) {
    %c0_i32 = arith.constant 0 : i32
    %c0_i32_0 = arith.constant 0 : i32
    %c0_i32_1 = arith.constant 0 : i32
    return %c0_i32, %c0_i32_0 : i32, i32
  }
  func.func @transform_2(%arg0: i32) -> (i32, i32) {
    %c0_i32 = arith.constant 0 : i32
    %c0_i32_0 = arith.constant 0 : i32
    %c0_i32_1 = arith.constant 0 : i32
    return %c0_i32, %c0_i32_0 : i32, i32
  }
  func.func @transform_3(%arg0: i32) -> (i32, i32) {
    %c0_i32 = arith.constant 0 : i32
    %c0_i32_0 = arith.constant 0 : i32
    %c0_i32_1 = arith.constant 0 : i32
    return %c0_i32, %c0_i32_0 : i32, i32
  }
  func.func @transform_4(%arg0: i32) -> (i32, i32) {
    %c0_i32 = arith.constant 0 : i32
    %c0_i32_0 = arith.constant 0 : i32
    %c0_i32_1 = arith.constant 0 : i32
    return %c0_i32, %c0_i32_0 : i32, i32
  }
  func.func @transform_5(%arg0: i32) -> (i32, i32) {
    %c0_i32 = arith.constant 0 : i32
    %c0_i32_0 = arith.constant 0 : i32
    %c0_i32_1 = arith.constant 0 : i32
    return %c0_i32, %c0_i32_0 : i32, i32
  }
  func.func @transform_6(%arg0: i32) -> (i32, i32) {
    %c0_i32 = arith.constant 0 : i32
    %c0_i32_0 = arith.constant 0 : i32
    %c0_i32_1 = arith.constant 0 : i32
    return %c0_i32, %c0_i32_0 : i32, i32
  }
  func.func @transform_7(%arg0: i32) -> (i32, i32) {
    %c0_i32 = arith.constant 0 : i32
    %c0_i32_0 = arith.constant 0 : i32
    %c0_i32_1 = arith.constant 0 : i32
    return %c0_i32, %c0_i32_0 : i32, i32
  }
  func.func @transform_8(%arg0: i32) -> (i32, i32) {
    %c0_i32 = arith.constant 0 : i32
    %c0_i32_0 = arith.constant 0 : i32
    %c0_i32_1 = arith.constant 0 : i32
    return %c0_i32, %c0_i32_0 : i32, i32
  }
  func.func @transform_9(%arg0: i32) -> (i32, i32) {
    %c0_i32 = arith.constant 0 : i32
    %c0_i32_0 = arith.constant 0 : i32
    return %arg0, %c0_i32 : i32, i32
  }
  func.func @transform_10(%arg0: i32) -> (i32, i32) {
    %c0_i32 = arith.constant 0 : i32
    %c0_i32_0 = arith.constant 0 : i32
    return %arg0, %c0_i32 : i32, i32
  }
  func.func @transform_11(%arg0: i32) -> (i32, i32) {
    %c0_i32 = arith.constant 0 : i32
    %c0_i32_0 = arith.constant 0 : i32
    return %arg0, %c0_i32 : i32, i32
  }
  func.func @transform_12(%arg0: i32) -> (i32, i32) {
    %c0_i32 = arith.constant 0 : i32
    %c0_i32_0 = arith.constant 0 : i32
    return %arg0, %c0_i32 : i32, i32
  }
}

</mosaic_0001>

<llo_original>
// kernel: tpu_custom_call.1
$region0: #{tpu_custom_call.1}
  #allocation0 [shape = 'u32[]', space=smem, size = 0x4, offset = 0x4, fixed_abs, tag = 'smem constant byte address 0x4 - core index']
  #allocation1 [shape = 'u32[144,128]{1,0:T(1,128)}', space=vmem, size = 0x12000, scoped, tag = 'internal scratch']
  %s0 = inlined_call_operand.hbm [shape: bf16[8,1024], index: 0, kind: input, shape index: {}]
  %s1 = inlined_call_operand.hbm [shape: bf16[1024,128], index: 1, kind: input, shape index: {}]
  %s2 = inlined_call_operand.hbm [shape: f32[1,128], index: 2, kind: input, shape index: {}]
  %s3 = inlined_call_operand.hbm [shape: bf16[128,256], index: 3, kind: input, shape index: {}]
  %s4 = inlined_call_operand.vmem [shape: f32[1,256], index: 4, kind: input, shape index: {}]
  %s5 = inlined_call_operand.hbm [shape: bf16[128,128], index: 5, kind: input, shape index: {}]
  %s6 = inlined_call_operand.vmem [shape: f32[1,128], index: 6, kind: input, shape index: {}]
  %s7 = inlined_call_operand.hbm [shape: bf16[128,1024], index: 7, kind: input, shape index: {}]
  %s8 = inlined_call_operand.vmem [shape: f32[1,1024], index: 8, kind: input, shape index: {}]
  %s9 = inlined_call_operand.vmem [shape: f32[8,128], index: 9, kind: input, shape index: {}]
  %s10 = inlined_call_operand.hbm [shape: bf16[8,1024], index: 10, kind: output, shape index: {0}]
  %s11 = inlined_call_operand.hbm [shape: f32[8,128], index: 11, kind: output, shape index: {1}]
  %s12 = inlined_call_operand.hbm [shape: f32[8,128], index: 12, kind: output, shape index: {2}]
  %13 = xla_tuple %s10, %s11, %s12
  %s14 = sld [smem:[#allocation0]]
  $region90: #{tpu_custom_call.1} parent=0
    _
  %s16 = ssub.s32 1, %s14
  %s17 = scalar_select 0, %s16, %s14
  $region1: #{tpu_custom_call.1} parent=0
    #allocation2 [shape = 'u8[16384]{0}', space=vmem, size = 0x4000, scoped, tag = 'input window, operand 0, single buffered']
    #allocation3 [shape = 's32[1]{0}', space=sflag, size = 0x4, scoped, tag = 'scoped memory for tpu_custom_call.1']
    #allocation4 [shape = 's32[1]{0}', space=sflag, size = 0x4, scoped, tag = 'scoped memory for tpu_custom_call.1']
    #allocation5 [shape = 'u8[262144]{0}', space=vmem, size = 0x40000, scoped, tag = 'input window, operand 1, single buffered']
    #allocation6 [shape = 's32[1]{0}', space=sflag, size = 0x4, scoped, tag = 'scoped memory for tpu_custom_call.1']
    #allocation7 [shape = 'u8[512]{0}', space=vmem, size = 0x400, scoped, tag = 'input window, operand 2, single buffered']
    #allocation8 [shape = 'u8[65536]{0}', space=vmem, size = 0x10000, scoped, tag = 'input window, operand 3, single buffered']
    #allocation9 [shape = 's32[1]{0}', space=sflag, size = 0x4, scoped, tag = 'scoped memory for tpu_custom_call.1']
    #allocation10 [shape = 'u8[32768]{0}', space=vmem, size = 0x8000, scoped, tag = 'input window, operand 5, single buffered']
    #allocation11 [shape = 'u8[262144]{0}', space=vmem, size = 0x40000, scoped, tag = 'input window, operand 7, single buffered']
    #allocation12 [shape = 's32[1]{0}', space=sflag, size = 0x4, scoped, tag = 'scoped memory for tpu_custom_call.1']
    #allocation13 [shape = 'u8[16384]{0}', space=vmem, size = 0x4000, scoped, tag = 'output window, operand 0, single buffered']
    #allocation14 [shape = 'u8[4096]{0}', space=vmem, size = 0x1000, scoped, tag = 'output window, operand 1, single buffered']
    #allocation15 [shape = 's32[1]{0}', space=sflag, size = 0x4, scoped, tag = 'scoped memory for tpu_custom_call.1']
    #allocation16 [shape = 'u8[4096]{0}', space=vmem, size = 0x1000, scoped, tag = 'output window, operand 2, single buffered']
    %18 = vsyncpa [#allocation3], 0
    %19 = vsyncpa [#allocation6], 0
    %20 = vsyncpa [#allocation9], 0
    %21 = vsyncpa [#allocation12], 0
    %22 = vsyncpa [#allocation4], 0
    %23 = vsyncpa [#allocation15], 0
    // Predicated region
    $region2: #{tpu_custom_call.1} parent=1 // pred_check
      _
    $region3: #{tpu_custom_call.1} parent=1 // pred_check_branch
      %25 = sbr.rel (0) target = $region5
    $region4: #{tpu_custom_call.1} parent=1 // pred_region
      %s27 = ssub.s32 512, 512
      %28 = vsyncadd [#allocation3], %s27
      %s30 = sshll.u32 [#allocation2], 4
      %s31 = int_to_ptr.vmem [resolvable:$true] %s30
      %33 = dma.hbm_to_vmem [thread:$0]  %s0, 512, %s31, [#allocation3]
    $region5: #{tpu_custom_call.1} parent=1 // pred_fallthru
      _
    // Predicated region
    $region6: #{tpu_custom_call.1} parent=1 // pred_check
      _
    $region7: #{tpu_custom_call.1} parent=1 // pred_check_branch
      %35 = sbr.rel (0) target = $region9
    $region8: #{tpu_custom_call.1} parent=1 // pred_region
      %s37 = ssub.s32 8192, 8192
      %38 = vsyncadd [#allocation6], %s37
      %s39 = sshll.u32 [#allocation5], 4
      %s40 = int_to_ptr.vmem [resolvable:$true] %s39
      %45 = dma.hbm_to_vmem [thread:$0]  %s1, 8192, %s40, [#allocation6], 64, 64, 4
    $region9: #{tpu_custom_call.1} parent=1 // pred_fallthru
      _
    // Predicated region
    $region10: #{tpu_custom_call.1} parent=1 // pred_check
      _
    $region11: #{tpu_custom_call.1} parent=1 // pred_check_branch
      %47 = sbr.rel (0) target = $region13
    $region12: #{tpu_custom_call.1} parent=1 // pred_region
      %s49 = ssub.s32 16, 16
      %50 = vsyncadd [#allocation6], %s49
      %s52 = sshll.u32 [#allocation7], 4
      %s53 = int_to_ptr.vmem [resolvable:$true] %s52
      %55 = dma.hbm_to_vmem [thread:$0]  %s2, 16, %s53, [#allocation6]
    $region13: #{tpu_custom_call.1} parent=1 // pred_fallthru
      _
    // Predicated region
    $region14: #{tpu_custom_call.1} parent=1 // pred_check
      _
    $region15: #{tpu_custom_call.1} parent=1 // pred_check_branch
      %57 = sbr.rel (0) target = $region17
    $region16: #{tpu_custom_call.1} parent=1 // pred_region
      %s59 = ssub.s32 2048, 2048
      %60 = vsyncadd [#allocation9], %s59
      %s61 = sshll.u32 [#allocation8], 4
      %s62 = int_to_ptr.vmem [resolvable:$true] %s61
      %67 = dma.hbm_to_vmem [thread:$0]  %s3, 2048, %s62, [#allocation9], 128, 128, 8
    $region17: #{tpu_custom_call.1} parent=1 // pred_fallthru
      _
    // Predicated region
    $region18: #{tpu_custom_call.1} parent=1 // pred_check
      _
    $region19: #{tpu_custom_call.1} parent=1 // pred_check_branch
      %69 = sbr.rel (0) target = $region21
    $region20: #{tpu_custom_call.1} parent=1 // pred_region
      _
    $region21: #{tpu_custom_call.1} parent=1 // pred_fallthru
      _
    // Predicated region
    $region22: #{tpu_custom_call.1} parent=1 // pred_check
      _
    $region23: #{tpu_custom_call.1} parent=1 // pred_check_branch
      %71 = sbr.rel (0) target = $region25
    $region24: #{tpu_custom_call.1} parent=1 // pred_region
      %s73 = ssub.s32 1024, 1024
      %74 = vsyncadd [#allocation9], %s73
      %s75 = sshll.u32 [#allocation10], 4
      %s76 = int_to_ptr.vmem [resolvable:$true] %s75
      %81 = dma.hbm_to_vmem [thread:$0]  %s5, 1024, %s76, [#allocation9], 64, 64, 4
    $region25: #{tpu_custom_call.1} parent=1 // pred_fallthru
      _
    // Predicated region
    $region26: #{tpu_custom_call.1} parent=1 // pred_check
      _
    $region27: #{tpu_custom_call.1} parent=1 // pred_check_branch
      %83 = sbr.rel (0) target = $region29
    $region28: #{tpu_custom_call.1} parent=1 // pred_region
      _
    $region29: #{tpu_custom_call.1} parent=1 // pred_fallthru
      _
    // Predicated region
    $region30: #{tpu_custom_call.1} parent=1 // pred_check
      _
    $region31: #{tpu_custom_call.1} parent=1 // pred_check_branch
      %85 = sbr.rel (0) target = $region33
    $region32: #{tpu_custom_call.1} parent=1 // pred_region
      %s87 = ssub.s32 8192, 8192
      %88 = vsyncadd [#allocation12], %s87
      %s89 = sshll.u32 [#allocation11], 4
      %s90 = int_to_ptr.vmem [resolvable:$true] %s89
      %95 = dma.hbm_to_vmem [thread:$0]  %s7, 8192, %s90, [#allocation12], 512, 512, 32
    $region33: #{tpu_custom_call.1} parent=1 // pred_fallthru
      _
    // Predicated region
    $region34: #{tpu_custom_call.1} parent=1 // pred_check
      _
    $region35: #{tpu_custom_call.1} parent=1 // pred_check_branch
      %97 = sbr.rel (0) target = $region37
    $region36: #{tpu_custom_call.1} parent=1 // pred_region
      _
    $region37: #{tpu_custom_call.1} parent=1 // pred_fallthru
      _
    // Predicated region
    $region38: #{tpu_custom_call.1} parent=1 // pred_check
      _
    $region39: #{tpu_custom_call.1} parent=1 // pred_check_branch
      %99 = sbr.rel (0) target = $region41
    $region40: #{tpu_custom_call.1} parent=1 // pred_region
      _
    $region41: #{tpu_custom_call.1} parent=1 // pred_fallthru
      _
    // Predicated region
    $region42: #{tpu_custom_call.1} parent=1 // pred_check
      _
    $region43: #{tpu_custom_call.1} parent=1 // pred_check_branch
      %101 = sbr.rel (0) target = $region45
    $region44: #{tpu_custom_call.1} parent=1 // pred_region
      %102 = dma.done [#allocation3], 512
    $region45: #{tpu_custom_call.1} parent=1 // pred_fallthru
      _
    // Predicated region
    $region46: #{tpu_custom_call.1} parent=1 // pred_check
      _
    $region47: #{tpu_custom_call.1} parent=1 // pred_check_branch
      %104 = sbr.rel (0) target = $region49
    $region48: #{tpu_custom_call.1} parent=1 // pred_region
      %105 = dma.done [#allocation6], 8192
    $region49: #{tpu_custom_call.1} parent=1 // pred_fallthru
      _
    // Predicated region
    $region50: #{tpu_custom_call.1} parent=1 // pred_check
      _
    $region51: #{tpu_custom_call.1} parent=1 // pred_check_branch
      %107 = sbr.rel (0) target = $region53
    $region52: #{tpu_custom_call.1} parent=1 // pred_region
      %108 = dma.done [#allocation6], 16
    $region53: #{tpu_custom_call.1} parent=1 // pred_fallthru
      _
    // Predicated region
    $region54: #{tpu_custom_call.1} parent=1 // pred_check
      _
    $region55: #{tpu_custom_call.1} parent=1 // pred_check_branch
      %110 = sbr.rel (0) target = $region57
    $region56: #{tpu_custom_call.1} parent=1 // pred_region
      %111 = dma.done [#allocation9], 2048
    $region57: #{tpu_custom_call.1} parent=1 // pred_fallthru
      _
    // Predicated region
    $region58: #{tpu_custom_call.1} parent=1 // pred_check
      _
    $region59: #{tpu_custom_call.1} parent=1 // pred_check_branch
      %113 = sbr.rel (0) target = $region61
    $region60: #{tpu_custom_call.1} parent=1 // pred_region
      %114 = dma.done [#allocation9], 1024
    $region61: #{tpu_custom_call.1} parent=1 // pred_fallthru
      _
    // Predicated region
    $region62: #{tpu_custom_call.1} parent=1 // pred_check
      _
    $region63: #{tpu_custom_call.1} parent=1 // pred_check_branch
      %116 = sbr.rel (0) target = $region65
    $region64: #{tpu_custom_call.1} parent=1 // pred_region
      %117 = dma.done [#allocation12], 8192
    $region65: #{tpu_custom_call.1} parent=1 // pred_fallthru
      _
    %v119 = vld [vmem:[#allocation2] sm:$0xff]
    %v120 = vld [vmem:[#allocation2 + $0x8] sm:$0xff]
    %v121 = vld [vmem:[#allocation2 + $0x10] sm:$0xff]
    %v122 = vld [vmem:[#allocation2 + $0x18] sm:$0xff]
    %v123 = vld [vmem:[#allocation5] sm:$0xf]
    %v124 = vld [vmem:[#allocation5 + $0x4] sm:$0xf]
    %v125 = vld [vmem:[#allocation5 + $0x8] sm:$0xf]
    %v126 = vld [vmem:[#allocation5 + $0xc] sm:$0xf]
    %v127 = vld [vmem:[#allocation5 + $0x10] sm:$0xf]
    %v128 = vld [vmem:[#allocation5 + $0x14] sm:$0xf]
    %v129 = vld [vmem:[#allocation5 + $0x18] sm:$0xf]
    %v130 = vld [vmem:[#allocation5 + $0x1c] sm:$0xf]
    %v131 = vld [vmem:[#allocation5 + $0x20] sm:$0xf]
    %v132 = vld [vmem:[#allocation5 + $0x24] sm:$0xf]
    %v133 = vld [vmem:[#allocation5 + $0x28] sm:$0xf]
    %v134 = vld [vmem:[#allocation5 + $0x2c] sm:$0xf]
    %v135 = vld [vmem:[#allocation5 + $0x30] sm:$0xf]
    %v136 = vld [vmem:[#allocation5 + $0x34] sm:$0xf]
    %v137 = vld [vmem:[#allocation5 + $0x38] sm:$0xf]
    %v138 = vld [vmem:[#allocation5 + $0x3c] sm:$0xf]
    %v139 = vld [vmem:[#allocation5 + $0x40] sm:$0xf]
    %v140 = vld [vmem:[#allocation5 + $0x44] sm:$0xf]
    %v141 = vld [vmem:[#allocation5 + $0x48] sm:$0xf]
    %v142 = vld [vmem:[#allocation5 + $0x4c] sm:$0xf]
    %v143 = vld [vmem:[#allocation5 + $0x50] sm:$0xf]
    %v144 = vld [vmem:[#allocation5 + $0x54] sm:$0xf]
    %v145 = vld [vmem:[#allocation5 + $0x58] sm:$0xf]
    %v146 = vld [vmem:[#allocation5 + $0x5c] sm:$0xf]
    %v147 = vld [vmem:[#allocation5 + $0x60] sm:$0xf]
    %v148 = vld [vmem:[#allocation5 + $0x64] sm:$0xf]
    %v149 = vld [vmem:[#allocation5 + $0x68] sm:$0xf]
    %v150 = vld [vmem:[#allocation5 + $0x6c] sm:$0xf]
    %v151 = vld [vmem:[#allocation5 + $0x70] sm:$0xf]
    %v152 = vld [vmem:[#allocation5 + $0x74] sm:$0xf]
    %v153 = vld [vmem:[#allocation5 + $0x78] sm:$0xf]
    %v154 = vld [vmem:[#allocation5 + $0x7c] sm:$0xf]
    %v155 = vld [vmem:[#allocation5 + $0x80] sm:$0xf]
    %v156 = vld [vmem:[#allocation5 + $0x84] sm:$0xf]
    %v157 = vld [vmem:[#allocation5 + $0x88] sm:$0xf]
    %v158 = vld [vmem:[#allocation5 + $0x8c] sm:$0xf]
    %v159 = vld [vmem:[#allocation5 + $0x90] sm:$0xf]
    %v160 = vld [vmem:[#allocation5 + $0x94] sm:$0xf]
    %v161 = vld [vmem:[#allocation5 + $0x98] sm:$0xf]
    %v162 = vld [vmem:[#allocation5 + $0x9c] sm:$0xf]
    %v163 = vld [vmem:[#allocation5 + $0xa0] sm:$0xf]
    %v164 = vld [vmem:[#allocation5 + $0xa4] sm:$0xf]
    %v165 = vld [vmem:[#allocation5 + $0xa8] sm:$0xf]
    %v166 = vld [vmem:[#allocation5 + $0xac] sm:$0xf]
    %v167 = vld [vmem:[#allocation5 + $0xb0] sm:$0xf]
    %v168 = vld [vmem:[#allocation5 + $0xb4] sm:$0xf]
    %v169 = vld [vmem:[#allocation5 + $0xb8] sm:$0xf]
    %v170 = vld [vmem:[#allocation5 + $0xbc] sm:$0xf]
    %v171 = vld [vmem:[#allocation5 + $0xc0] sm:$0xf]
    %v172 = vld [vmem:[#allocation5 + $0xc4] sm:$0xf]
    %v173 = vld [vmem:[#allocation5 + $0xc8] sm:$0xf]
    %v174 = vld [vmem:[#allocation5 + $0xcc] sm:$0xf]
    %v175 = vld [vmem:[#allocation5 + $0xd0] sm:$0xf]
    %v176 = vld [vmem:[#allocation5 + $0xd4] sm:$0xf]
    %v177 = vld [vmem:[#allocation5 + $0xd8] sm:$0xf]
    %v178 = vld [vmem:[#allocation5 + $0xdc] sm:$0xf]
    %v179 = vld [vmem:[#allocation5 + $0xe0] sm:$0xf]
    %v180 = vld [vmem:[#allocation5 + $0xe4] sm:$0xf]
    %v181 = vld [vmem:[#allocation5 + $0xe8] sm:$0xf]
    %v182 = vld [vmem:[#allocation5 + $0xec] sm:$0xf]
    %v183 = vld [vmem:[#allocation5 + $0xf0] sm:$0xf]
    %v184 = vld [vmem:[#allocation5 + $0xf4] sm:$0xf]
    %v185 = vld [vmem:[#allocation5 + $0xf8] sm:$0xf]
    %v186 = vld [vmem:[#allocation5 + $0xfc] sm:$0xf]
    %v187 = vld [vmem:[#allocation5 + $0x100] sm:$0xf]
    %v188 = vld [vmem:[#allocation5 + $0x104] sm:$0xf]
    %v189 = vld [vmem:[#allocation5 + $0x108] sm:$0xf]
    %v190 = vld [vmem:[#allocation5 + $0x10c] sm:$0xf]
    %v191 = vld [vmem:[#allocation5 + $0x110] sm:$0xf]
    %v192 = vld [vmem:[#allocation5 + $0x114] sm:$0xf]
    %v193 = vld [vmem:[#allocation5 + $0x118] sm:$0xf]
    %v194 = vld [vmem:[#allocation5 + $0x11c] sm:$0xf]
    %v195 = vld [vmem:[#allocation5 + $0x120] sm:$0xf]
    %v196 = vld [vmem:[#allocation5 + $0x124] sm:$0xf]
    %v197 = vld [vmem:[#allocation5 + $0x128] sm:$0xf]
    %v198 = vld [vmem:[#allocation5 + $0x12c] sm:$0xf]
    %v199 = vld [vmem:[#allocation5 + $0x130] sm:$0xf]
    %v200 = vld [vmem:[#allocation5 + $0x134] sm:$0xf]
    %v201 = vld [vmem:[#allocation5 + $0x138] sm:$0xf]
    %v202 = vld [vmem:[#allocation5 + $0x13c] sm:$0xf]
    %v203 = vld [vmem:[#allocation5 + $0x140] sm:$0xf]
    %v204 = vld [vmem:[#allocation5 + $0x144] sm:$0xf]
    %v205 = vld [vmem:[#allocation5 + $0x148] sm:$0xf]
    %v206 = vld [vmem:[#allocation5 + $0x14c] sm:$0xf]
    %v207 = vld [vmem:[#allocation5 + $0x150] sm:$0xf]
    %v208 = vld [vmem:[#allocation5 + $0x154] sm:$0xf]
    %v209 = vld [vmem:[#allocation5 + $0x158] sm:$0xf]
    %v210 = vld [vmem:[#allocation5 + $0x15c] sm:$0xf]
    %v211 = vld [vmem:[#allocation5 + $0x160] sm:$0xf]
    %v212 = vld [vmem:[#allocation5 + $0x164] sm:$0xf]
    %v213 = vld [vmem:[#allocation5 + $0x168] sm:$0xf]
    %v214 = vld [vmem:[#allocation5 + $0x16c] sm:$0xf]
    %v215 = vld [vmem:[#allocation5 + $0x170] sm:$0xf]
    %v216 = vld [vmem:[#allocation5 + $0x174] sm:$0xf]
    %v217 = vld [vmem:[#allocation5 + $0x178] sm:$0xf]
    %v218 = vld [vmem:[#allocation5 + $0x17c] sm:$0xf]
    %v219 = vld [vmem:[#allocation5 + $0x180] sm:$0xf]
    %v220 = vld [vmem:[#allocation5 + $0x184] sm:$0xf]
    %v221 = vld [vmem:[#allocation5 + $0x188] sm:$0xf]
    %v222 = vld [vmem:[#allocation5 + $0x18c] sm:$0xf]
    %v223 = vld [vmem:[#allocation5 + $0x190] sm:$0xf]
    %v224 = vld [vmem:[#allocation5 + $0x194] sm:$0xf]
    %v225 = vld [vmem:[#allocation5 + $0x198] sm:$0xf]
    %v226 = vld [vmem:[#allocation5 + $0x19c] sm:$0xf]
    %v227 = vld [vmem:[#allocation5 + $0x1a0] sm:$0xf]
    %v228 = vld [vmem:[#allocation5 + $0x1a4] sm:$0xf]
    %v229 = vld [vmem:[#allocation5 + $0x1a8] sm:$0xf]
    %v230 = vld [vmem:[#allocation5 + $0x1ac] sm:$0xf]
    %v231 = vld [vmem:[#allocation5 + $0x1b0] sm:$0xf]
    %v232 = vld [vmem:[#allocation5 + $0x1b4] sm:$0xf]
    %v233 = vld [vmem:[#allocation5 + $0x1b8] sm:$0xf]
    %v234 = vld [vmem:[#allocation5 + $0x1bc] sm:$0xf]
    %v235 = vld [vmem:[#allocation5 + $0x1c0] sm:$0xf]
    %v236 = vld [vmem:[#allocation5 + $0x1c4] sm:$0xf]
    %v237 = vld [vmem:[#allocation5 + $0x1c8] sm:$0xf]
    %v238 = vld [vmem:[#allocation5 + $0x1cc] sm:$0xf]
    %v239 = vld [vmem:[#allocation5 + $0x1d0] sm:$0xf]
    %v240 = vld [vmem:[#allocation5 + $0x1d4] sm:$0xf]
    %v241 = vld [vmem:[#allocation5 + $0x1d8] sm:$0xf]
    %v242 = vld [vmem:[#allocation5 + $0x1dc] sm:$0xf]
    %v243 = vld [vmem:[#allocation5 + $0x1e0] sm:$0xf]
    %v244 = vld [vmem:[#allocation5 + $0x1e4] sm:$0xf]
    %v245 = vld [vmem:[#allocation5 + $0x1e8] sm:$0xf]
    %v246 = vld [vmem:[#allocation5 + $0x1ec] sm:$0xf]
    %v247 = vld [vmem:[#allocation5 + $0x1f0] sm:$0xf]
    %v248 = vld [vmem:[#allocation5 + $0x1f4] sm:$0xf]
    %v249 = vld [vmem:[#allocation5 + $0x1f8] sm:$0xf]
    %v250 = vld [vmem:[#allocation5 + $0x1fc] sm:$0xf]
    %v251 = vld [vmem:[#allocation7] sm:$0x1]
    %v253 = vlaneseq
    %v254 = vshrl.u32 %v253, 7
    %v255 = vsub.s32 0, %v254
    %v256 = vrot.slane %v251, %v255
    %v262 = vunpack.c.l.b16 %v119
    %v263 = vunpack.c.h.b16 %v119
    %v264 = vunpack.c.l.b16 %v120
    %v265 = vunpack.c.h.b16 %v120
    %v266 = vunpack.c.l.b16 %v121
    %v267 = vunpack.c.h.b16 %v121
    %v268 = vunpack.c.l.b16 %v122
    %v269 = vunpack.c.h.b16 %v122
    %v270 = vpack.c.b16 %v262, %v262
    %v271 = vpack.c.b16 %v263, %v263
    %v272 = vpack.c.b16 %v264, %v264
    %v273 = vpack.c.b16 %v265, %v265
    %v274 = vpack.c.b16 %v266, %v266
    %v275 = vpack.c.b16 %v267, %v267
    %v276 = vpack.c.b16 %v268, %v268
    %v277 = vpack.c.b16 %v269, %v269
    %v414 = vunpack.c.l.b16 %v123
    %v415 = vunpack.c.l.b16 %v124
    %v416 = vunpack.c.l.b16 %v125
    %v417 = vunpack.c.l.b16 %v126
    %v418 = vunpack.c.l.b16 %v127
    %v419 = vunpack.c.l.b16 %v128
    %v420 = vunpack.c.l.b16 %v129
    %v421 = vunpack.c.l.b16 %v130
    %v422 = vunpack.c.l.b16 %v131
    %v423 = vunpack.c.l.b16 %v132
    %v424 = vunpack.c.l.b16 %v133
    %v425 = vunpack.c.l.b16 %v134
    %v426 = vunpack.c.l.b16 %v135
    %v427 = vunpack.c.l.b16 %v136
    %v428 = vunpack.c.l.b16 %v137
    %v429 = vunpack.c.l.b16 %v138
    %v430 = vunpack.c.l.b16 %v139
    %v431 = vunpack.c.l.b16 %v140
    %v432 = vunpack.c.l.b16 %v141
    %v433 = vunpack.c.l.b16 %v142
    %v434 = vunpack.c.l.b16 %v143
    %v435 = vunpack.c.l.b16 %v144
    %v436 = vunpack.c.l.b16 %v145
    %v437 = vunpack.c.l.b16 %v146
    %v438 = vunpack.c.l.b16 %v147
    %v439 = vunpack.c.l.b16 %v148
    %v440 = vunpack.c.l.b16 %v149
    %v441 = vunpack.c.l.b16 %v150
    %v442 = vunpack.c.l.b16 %v151
    %v443 = vunpack.c.l.b16 %v152
    %v444 = vunpack.c.l.b16 %v153
    %v445 = vunpack.c.l.b16 %v154
    %v446 = vunpack.c.l.b16 %v155
    %v447 = vunpack.c.l.b16 %v156
    %v448 = vunpack.c.l.b16 %v157
    %v449 = vunpack.c.l.b16 %v158
    %v450 = vunpack.c.l.b16 %v159
    %v451 = vunpack.c.l.b16 %v160
    %v452 = vunpack.c.l.b16 %v161
    %v453 = vunpack.c.l.b16 %v162
    %v454 = vunpack.c.l.b16 %v163
    %v455 = vunpack.c.l.b16 %v164
    %v456 = vunpack.c.l.b16 %v165
    %v457 = vunpack.c.l.b16 %v166
    %v458 = vunpack.c.l.b16 %v167
    %v459 = vunpack.c.l.b16 %v168
    %v460 = vunpack.c.l.b16 %v169
    %v461 = vunpack.c.l.b16 %v170
    %v462 = vunpack.c.l.b16 %v171
    %v463 = vunpack.c.l.b16 %v172
    %v464 = vunpack.c.l.b16 %v173
    %v465 = vunpack.c.l.b16 %v174
    %v466 = vunpack.c.l.b16 %v175
    %v467 = vunpack.c.l.b16 %v176
    %v468 = vunpack.c.l.b16 %v177
    %v469 = vunpack.c.l.b16 %v178
    %v470 = vunpack.c.l.b16 %v179
    %v471 = vunpack.c.l.b16 %v180
    %v472 = vunpack.c.l.b16 %v181
    %v473 = vunpack.c.l.b16 %v182
    %v474 = vunpack.c.l.b16 %v183
    %v475 = vunpack.c.l.b16 %v184
    %v476 = vunpack.c.l.b16 %v185
    %v477 = vunpack.c.l.b16 %v186
    %v478 = vunpack.c.l.b16 %v187
    %v479 = vunpack.c.l.b16 %v188
    %v480 = vunpack.c.l.b16 %v189
    %v481 = vunpack.c.l.b16 %v190
    %v482 = vunpack.c.l.b16 %v191
    %v483 = vunpack.c.l.b16 %v192
    %v484 = vunpack.c.l.b16 %v193
    %v485 = vunpack.c.l.b16 %v194
    %v486 = vunpack.c.l.b16 %v195
    %v487 = vunpack.c.l.b16 %v196
    %v488 = vunpack.c.l.b16 %v197
    %v489 = vunpack.c.l.b16 %v198
    %v490 = vunpack.c.l.b16 %v199
    %v491 = vunpack.c.l.b16 %v200
    %v492 = vunpack.c.l.b16 %v201
    %v493 = vunpack.c.l.b16 %v202
    %v494 = vunpack.c.l.b16 %v203
    %v495 = vunpack.c.l.b16 %v204
    %v496 = vunpack.c.l.b16 %v205
    %v497 = vunpack.c.l.b16 %v206
    %v498 = vunpack.c.l.b16 %v207
    %v499 = vunpack.c.l.b16 %v208
    %v500 = vunpack.c.l.b16 %v209
    %v501 = vunpack.c.l.b16 %v210
    %v502 = vunpack.c.l.b16 %v211
    %v503 = vunpack.c.l.b16 %v212
    %v504 = vunpack.c.l.b16 %v213
    %v505 = vunpack.c.l.b16 %v214
    %v506 = vunpack.c.l.b16 %v215
    %v507 = vunpack.c.l.b16 %v216
    %v508 = vunpack.c.l.b16 %v217
    %v509 = vunpack.c.l.b16 %v218
    %v510 = vunpack.c.l.b16 %v219
    %v511 = vunpack.c.l.b16 %v220
    %v512 = vunpack.c.l.b16 %v221
    %v513 = vunpack.c.l.b16 %v222
    %v514 = vunpack.c.l.b16 %v223
    %v515 = vunpack.c.l.b16 %v224
    %v516 = vunpack.c.l.b16 %v225
    %v517 = vunpack.c.l.b16 %v226
    %v518 = vunpack.c.l.b16 %v227
    %v519 = vunpack.c.l.b16 %v228
    %v520 = vunpack.c.l.b16 %v229
    %v521 = vunpack.c.l.b16 %v230
    %v522 = vunpack.c.l.b16 %v231
    %v523 = vunpack.c.l.b16 %v232
    %v524 = vunpack.c.l.b16 %v233
    %v525 = vunpack.c.l.b16 %v234
    %v526 = vunpack.c.l.b16 %v235
    %v527 = vunpack.c.l.b16 %v236
    %v528 = vunpack.c.l.b16 %v237
    %v529 = vunpack.c.l.b16 %v238
    %v530 = vunpack.c.l.b16 %v239
    %v531 = vunpack.c.l.b16 %v240
    %v532 = vunpack.c.l.b16 %v241
    %v533 = vunpack.c.l.b16 %v242
    %v534 = vunpack.c.l.b16 %v243
    %v535 = vunpack.c.l.b16 %v244
    %v536 = vunpack.c.l.b16 %v245
    %v537 = vunpack.c.l.b16 %v246
    %v538 = vunpack.c.l.b16 %v247
    %v539 = vunpack.c.l.b16 %v248
    %v540 = vunpack.c.l.b16 %v249
    %v541 = vunpack.c.l.b16 %v250
    %v542 = vpack.c.b16 %v415, %v414
    %v543 = vpack.c.b16 %v417, %v416
    %v544 = vpack.c.b16 %v419, %v418
    %v545 = vpack.c.b16 %v421, %v420
    %v546 = vpack.c.b16 %v423, %v422
    %v547 = vpack.c.b16 %v425, %v424
    %v548 = vpack.c.b16 %v427, %v426
    %v549 = vpack.c.b16 %v429, %v428
    %v550 = vpack.c.b16 %v431, %v430
    %v551 = vpack.c.b16 %v433, %v432
    %v552 = vpack.c.b16 %v435, %v434
    %v553 = vpack.c.b16 %v437, %v436
    %v554 = vpack.c.b16 %v439, %v438
    %v555 = vpack.c.b16 %v441, %v440
    %v556 = vpack.c.b16 %v443, %v442
    %v557 = vpack.c.b16 %v445, %v444
    %v558 = vpack.c.b16 %v447, %v446
    %v559 = vpack.c.b16 %v449, %v448
    %v560 = vpack.c.b16 %v451, %v450
    %v561 = vpack.c.b16 %v453, %v452
    %v562 = vpack.c.b16 %v455, %v454
    %v563 = vpack.c.b16 %v457, %v456
    %v564 = vpack.c.b16 %v459, %v458
    %v565 = vpack.c.b16 %v461, %v460
    %v566 = vpack.c.b16 %v463, %v462
    %v567 = vpack.c.b16 %v465, %v464
    %v568 = vpack.c.b16 %v467, %v466
    %v569 = vpack.c.b16 %v469, %v468
    %v570 = vpack.c.b16 %v471, %v470
    %v571 = vpack.c.b16 %v473, %v472
    %v572 = vpack.c.b16 %v475, %v474
    %v573 = vpack.c.b16 %v477, %v476
    %v574 = vpack.c.b16 %v479, %v478
    %v575 = vpack.c.b16 %v481, %v480
    %v576 = vpack.c.b16 %v483, %v482
    %v577 = vpack.c.b16 %v485, %v484
    %v578 = vpack.c.b16 %v487, %v486
    %v579 = vpack.c.b16 %v489, %v488
    %v580 = vpack.c.b16 %v491, %v490
    %v581 = vpack.c.b16 %v493, %v492
    %v582 = vpack.c.b16 %v495, %v494
    %v583 = vpack.c.b16 %v497, %v496
    %v584 = vpack.c.b16 %v499, %v498
    %v585 = vpack.c.b16 %v501, %v500
    %v586 = vpack.c.b16 %v503, %v502
    %v587 = vpack.c.b16 %v505, %v504
    %v588 = vpack.c.b16 %v507, %v506
    %v589 = vpack.c.b16 %v509, %v508
    %v590 = vpack.c.b16 %v511, %v510
    %v591 = vpack.c.b16 %v513, %v512
    %v592 = vpack.c.b16 %v515, %v514
    %v593 = vpack.c.b16 %v517, %v516
    %v594 = vpack.c.b16 %v519, %v518
    %v595 = vpack.c.b16 %v521, %v520
    %v596 = vpack.c.b16 %v523, %v522
    %v597 = vpack.c.b16 %v525, %v524
    %v598 = vpack.c.b16 %v527, %v526
    %v599 = vpack.c.b16 %v529, %v528
    %v600 = vpack.c.b16 %v531, %v530
    %v601 = vpack.c.b16 %v533, %v532
    %v602 = vpack.c.b16 %v535, %v534
    %v603 = vpack.c.b16 %v537, %v536
    %v604 = vpack.c.b16 %v539, %v538
    %v605 = vpack.c.b16 %v541, %v540
    %670 = vmatprep.subr.bf16.mxu0 0
    %671 = vmatpush1.bf16.msra.mxu0 %v542
    %672 = vmatprep.subr.bf16.mxu0 0
    %673 = vmatpush1.bf16.msra.mxu0 %v543
    %674 = vmatprep.subr.bf16.mxu0 0
    %675 = vmatpush1.bf16.msra.mxu0 %v544
    %676 = vmatprep.subr.bf16.mxu0 0
    %677 = vmatpush1.bf16.msra.mxu0 %v545
    %678 = vmatprep.subr.bf16.mxu0 0
    %679 = vmatpush1.bf16.msra.mxu0 %v546
    %680 = vmatprep.subr.bf16.mxu0 0
    %681 = vmatpush1.bf16.msra.mxu0 %v547
    %682 = vmatprep.subr.bf16.mxu0 0
    %683 = vmatpush1.bf16.msra.mxu0 %v548
    %684 = vmatprep.subr.bf16.mxu0 0
    %685 = vmatpush1.bf16.msra.mxu0 %v549
    %686 = vmatprep.subr.bf16.mxu0 0
    %687 = vmatpush1.bf16.msra.mxu0 %v550
    %688 = vmatprep.subr.bf16.mxu0 0
    %689 = vmatpush1.bf16.msra.mxu0 %v551
    %690 = vmatprep.subr.bf16.mxu0 0
    %691 = vmatpush1.bf16.msra.mxu0 %v552
    %692 = vmatprep.subr.bf16.mxu0 0
    %693 = vmatpush1.bf16.msra.mxu0 %v553
    %694 = vmatprep.subr.bf16.mxu0 0
    %695 = vmatpush1.bf16.msra.mxu0 %v554
    %696 = vmatprep.subr.bf16.mxu0 0
    %697 = vmatpush1.bf16.msra.mxu0 %v555
    %698 = vmatprep.subr.bf16.mxu0 0
    %699 = vmatpush1.bf16.msra.mxu0 %v556
    %700 = vmatprep.subr.bf16.mxu0 0
    %701 = vmatpush1.bf16.msra.mxu0 %v557
    %702 = vmatprep.mubr.bf16.mxu0 %v271
    %703 = vmatmul.mubr.bf16.gmra.mrb[0].mxu0 %v270
    %v704 = vpop.f32.mrb[0].mxu0
    %v705 = vadd.f32 %v256, %v704
    %v706 = vpop.f32.mrb[0].mxu0
    %v707 = vpop.f32.mrb[0].mxu0
    %v708 = vpop.f32.mrb[0].mxu0
    %709 = vdwg.mxu0
    %710 = vmatprep.subr.bf16.mxu0 0
    %711 = vmatpush1.bf16.msra.mxu0 %v558
    %712 = vmatprep.subr.bf16.mxu0 0
    %713 = vmatpush1.bf16.msra.mxu0 %v559
    %714 = vmatprep.subr.bf16.mxu0 0
    %715 = vmatpush1.bf16.msra.mxu0 %v560
    %716 = vmatprep.subr.bf16.mxu0 0
    %717 = vmatpush1.bf16.msra.mxu0 %v561
    %718 = vmatprep.subr.bf16.mxu0 0
    %719 = vmatpush1.bf16.msra.mxu0 %v562
    %720 = vmatprep.subr.bf16.mxu0 0
    %721 = vmatpush1.bf16.msra.mxu0 %v563
    %722 = vmatprep.subr.bf16.mxu0 0
    %723 = vmatpush1.bf16.msra.mxu0 %v564
    %724 = vmatprep.subr.bf16.mxu0 0
    %725 = vmatpush1.bf16.msra.mxu0 %v565
    %726 = vmatprep.subr.bf16.mxu0 0
    %727 = vmatpush1.bf16.msra.mxu0 %v566
    %728 = vmatprep.subr.bf16.mxu0 0
    %729 = vmatpush1.bf16.msra.mxu0 %v567
    %730 = vmatprep.subr.bf16.mxu0 0
    %731 = vmatpush1.bf16.msra.mxu0 %v568
    %732 = vmatprep.subr.bf16.mxu0 0
    %733 = vmatpush1.bf16.msra.mxu0 %v569
    %734 = vmatprep.subr.bf16.mxu0 0
    %735 = vmatpush1.bf16.msra.mxu0 %v570
    %736 = vmatprep.subr.bf16.mxu0 0
    %737 = vmatpush1.bf16.msra.mxu0 %v571
    %738 = vmatprep.subr.bf16.mxu0 0
    %739 = vmatpush1.bf16.msra.mxu0 %v572
    %740 = vmatprep.subr.bf16.mxu0 0
    %741 = vmatpush1.bf16.msra.mxu0 %v573
    %742 = vmatprep.mubr.bf16.mxu0 %v273
    %743 = vmatmul.mubr.bf16.gmra.mrb[0].mxu0 %v272
    %v744 = vpop.f32.mrb[0].mxu0
    %v745 = vadd.f32 %v705, %v744
    %v746 = vpop.f32.mrb[0].mxu0
    %v747 = vpop.f32.mrb[0].mxu0
    %v748 = vpop.f32.mrb[0].mxu0
    %749 = vdwg.mxu0
    %750 = vmatprep.subr.bf16.mxu0 0
    %751 = vmatpush1.bf16.msra.mxu0 %v574
    %752 = vmatprep.subr.bf16.mxu0 0
    %753 = vmatpush1.bf16.msra.mxu0 %v575
    %754 = vmatprep.subr.bf16.mxu0 0
    %755 = vmatpush1.bf16.msra.mxu0 %v576
    %756 = vmatprep.subr.bf16.mxu0 0
    %757 = vmatpush1.bf16.msra.mxu0 %v577
    %758 = vmatprep.subr.bf16.mxu0 0
    %759 = vmatpush1.bf16.msra.mxu0 %v578
    %760 = vmatprep.subr.bf16.mxu0 0
    %761 = vmatpush1.bf16.msra.mxu0 %v579
    %762 = vmatprep.subr.bf16.mxu0 0
    %763 = vmatpush1.bf16.msra.mxu0 %v580
    %764 = vmatprep.subr.bf16.mxu0 0
    %765 = vmatpush1.bf16.msra.mxu0 %v581
    %766 = vmatprep.subr.bf16.mxu0 0
    %767 = vmatpush1.bf16.msra.mxu0 %v582
    %768 = vmatprep.subr.bf16.mxu0 0
    %769 = vmatpush1.bf16.msra.mxu0 %v583
    %770 = vmatprep.subr.bf16.mxu0 0
    %771 = vmatpush1.bf16.msra.mxu0 %v584
    %772 = vmatprep.subr.bf16.mxu0 0
    %773 = vmatpush1.bf16.msra.mxu0 %v585
    %774 = vmatprep.subr.bf16.mxu0 0
    %775 = vmatpush1.bf16.msra.mxu0 %v586
    %776 = vmatprep.subr.bf16.mxu0 0
    %777 = vmatpush1.bf16.msra.mxu0 %v587
    %778 = vmatprep.subr.bf16.mxu0 0
    %779 = vmatpush1.bf16.msra.mxu0 %v588
    %780 = vmatprep.subr.bf16.mxu0 0
    %781 = vmatpush1.bf16.msra.mxu0 %v589
    %782 = vmatprep.mubr.bf16.mxu0 %v275
    %783 = vmatmul.mubr.bf16.gmra.mrb[0].mxu0 %v274
    %v784 = vpop.f32.mrb[0].mxu0
    %v785 = vadd.f32 %v745, %v784
    %v786 = vpop.f32.mrb[0].mxu0
    %v787 = vpop.f32.mrb[0].mxu0
    %v788 = vpop.f32.mrb[0].mxu0
    %789 = vdwg.mxu0
    %790 = vmatprep.subr.bf16.mxu0 0
    %791 = vmatpush1.bf16.msra.mxu0 %v590
    %792 = vmatprep.subr.bf16.mxu0 0
    %793 = vmatpush1.bf16.msra.mxu0 %v591
    %794 = vmatprep.subr.bf16.mxu0 0
    %795 = vmatpush1.bf16.msra.mxu0 %v592
    %796 = vmatprep.subr.bf16.mxu0 0
    %797 = vmatpush1.bf16.msra.mxu0 %v593
    %798 = vmatprep.subr.bf16.mxu0 0
    %799 = vmatpush1.bf16.msra.mxu0 %v594
    %800 = vmatprep.subr.bf16.mxu0 0
    %801 = vmatpush1.bf16.msra.mxu0 %v595
    %802 = vmatprep.subr.bf16.mxu0 0
    %803 = vmatpush1.bf16.msra.mxu0 %v596
    %804 = vmatprep.subr.bf16.mxu0 0
    %805 = vmatpush1.bf16.msra.mxu0 %v597
    %806 = vmatprep.subr.bf16.mxu0 0
    %807 = vmatpush1.bf16.msra.mxu0 %v598
    %808 = vmatprep.subr.bf16.mxu0 0
    %809 = vmatpush1.bf16.msra.mxu0 %v599
    %810 = vmatprep.subr.bf16.mxu0 0
    %811 = vmatpush1.bf16.msra.mxu0 %v600
    %812 = vmatprep.subr.bf16.mxu0 0
    %813 = vmatpush1.bf16.msra.mxu0 %v601
    %814 = vmatprep.subr.bf16.mxu0 0
    %815 = vmatpush1.bf16.msra.mxu0 %v602
    %816 = vmatprep.subr.bf16.mxu0 0
    %817 = vmatpush1.bf16.msra.mxu0 %v603
    %818 = vmatprep.subr.bf16.mxu0 0
    %819 = vmatpush1.bf16.msra.mxu0 %v604
    %820 = vmatprep.subr.bf16.mxu0 0
    %821 = vmatpush1.bf16.msra.mxu0 %v605
    %822 = vmatprep.mubr.bf16.mxu0 %v277
    %823 = vmatmul.mubr.bf16.gmra.mrb[0].mxu0 %v276
    %v824 = vpop.f32.mrb[0].mxu0
    %v825 = vadd.f32 %v785, %v824
    %v826 = vpop.f32.mrb[0].mxu0
    %v827 = vpop.f32.mrb[0].mxu0
    %v828 = vpop.f32.mrb[0].mxu0
    %829 = vdwg.mxu0
    %v830 = vmax.f32 %v825, 0.0
    %v831 = vpack.c.bf16 %v830, %v830
    %v832 = vld [vmem:[#allocation8] sm:$0xff]
    %v833 = vld [vmem:[#allocation8 + $0x8] sm:$0xff]
    %v834 = vld [vmem:[#allocation8 + $0x10] sm:$0xff]
    %v835 = vld [vmem:[#allocation8 + $0x18] sm:$0xff]
    %v836 = vld [vmem:[#allocation8 + $0x20] sm:$0xff]
    %v837 = vld [vmem:[#allocation8 + $0x28] sm:$0xff]
    %v838 = vld [vmem:[#allocation8 + $0x30] sm:$0xff]
    %v839 = vld [vmem:[#allocation8 + $0x38] sm:$0xff]
    %v840 = vld [vmem:[#allocation8 + $0x40] sm:$0xff]
    %v841 = vld [vmem:[#allocation8 + $0x48] sm:$0xff]
    %v842 = vld [vmem:[#allocation8 + $0x50] sm:$0xff]
    %v843 = vld [vmem:[#allocation8 + $0x58] sm:$0xff]
    %v844 = vld [vmem:[#allocation8 + $0x60] sm:$0xff]
    %v845 = vld [vmem:[#allocation8 + $0x68] sm:$0xff]
    %v846 = vld [vmem:[#allocation8 + $0x70] sm:$0xff]
    %v847 = vld [vmem:[#allocation8 + $0x78] sm:$0xff]
    %v848 = vld [vmem:[%s4] sm:$0x3]
    %v850 = vlaneseq
    %v851 = vshrl.u32 %v850, 7
    %v852 = vsub.s32 0, %v851
    %v853 = vrot.slane %v848, %v852
    %v854 = vlaneseq
    %v855 = vshrl.u32 %v854, 7
    %v856 = vsub.s32 1, %v855
    %v857 = vrot.slane %v848, %v856
    %v876 = vunpack.c.l.b16 %v832
    %v877 = vunpack.c.h.b16 %v832
    %v878 = vunpack.c.l.b16 %v833
    %v879 = vunpack.c.h.b16 %v833
    %v880 = vunpack.c.l.b16 %v834
    %v881 = vunpack.c.h.b16 %v834
    %v882 = vunpack.c.l.b16 %v835
    %v883 = vunpack.c.h.b16 %v835
    %v884 = vunpack.c.l.b16 %v836
    %v885 = vunpack.c.h.b16 %v836
    %v886 = vunpack.c.l.b16 %v837
    %v887 = vunpack.c.h.b16 %v837
    %v888 = vunpack.c.l.b16 %v838
    %v889 = vunpack.c.h.b16 %v838
    %v890 = vunpack.c.l.b16 %v839
    %v891 = vunpack.c.h.b16 %v839
    %v892 = vunpack.c.l.b16 %v840
    %v893 = vunpack.c.h.b16 %v840
    %v894 = vunpack.c.l.b16 %v841
    %v895 = vunpack.c.h.b16 %v841
    %v896 = vunpack.c.l.b16 %v842
    %v897 = vunpack.c.h.b16 %v842
    %v898 = vunpack.c.l.b16 %v843
    %v899 = vunpack.c.h.b16 %v843
    %v900 = vunpack.c.l.b16 %v844
    %v901 = vunpack.c.h.b16 %v844
    %v902 = vunpack.c.l.b16 %v845
    %v903 = vunpack.c.h.b16 %v845
    %v904 = vunpack.c.l.b16 %v846
    %v905 = vunpack.c.h.b16 %v846
    %v906 = vunpack.c.l.b16 %v847
    %v907 = vunpack.c.h.b16 %v847
    %v908 = vpack.c.b16 %v878, %v876
    %v909 = vpack.c.b16 %v879, %v877
    %v910 = vpack.c.b16 %v882, %v880
    %v911 = vpack.c.b16 %v883, %v881
    %v912 = vpack.c.b16 %v886, %v884
    %v913 = vpack.c.b16 %v887, %v885
    %v914 = vpack.c.b16 %v890, %v888
    %v915 = vpack.c.b16 %v891, %v889
    %v916 = vpack.c.b16 %v894, %v892
    %v917 = vpack.c.b16 %v895, %v893
    %v918 = vpack.c.b16 %v898, %v896
    %v919 = vpack.c.b16 %v899, %v897
    %v920 = vpack.c.b16 %v902, %v900
    %v921 = vpack.c.b16 %v903, %v901
    %v922 = vpack.c.b16 %v906, %v904
    %v923 = vpack.c.b16 %v907, %v905
    %940 = vmatprep.subr.bf16.mxu0 %v909
    %941 = vmatpush1.bf16.msra.mxu0 %v908
    %942 = vmatprep.subr.bf16.mxu0 %v911
    %943 = vmatpush1.bf16.msra.mxu0 %v910
    %944 = vmatprep.subr.bf16.mxu0 %v913
    %945 = vmatpush1.bf16.msra.mxu0 %v912
    %946 = vmatprep.subr.bf16.mxu0 %v915
    %947 = vmatpush1.bf16.msra.mxu0 %v914
    %948 = vmatprep.subr.bf16.mxu0 %v917
    %949 = vmatpush1.bf16.msra.mxu0 %v916
    %950 = vmatprep.subr.bf16.mxu0 %v919
    %951 = vmatpush1.bf16.msra.mxu0 %v918
    %952 = vmatprep.subr.bf16.mxu0 %v921
    %953 = vmatpush1.bf16.msra.mxu0 %v920
    %954 = vmatprep.subr.bf16.mxu0 %v923
    %955 = vmatpush1.bf16.msra.mxu0 %v922
    %956 = vmatprep.subr.bf16.mxu0 0
    %957 = vmatpush1.bf16.msra.mxu0 0
    %958 = vmatprep.subr.bf16.mxu0 0
    %959 = vmatpush1.bf16.msra.mxu0 0
    %960 = vmatprep.subr.bf16.mxu0 0
    %961 = vmatpush1.bf16.msra.mxu0 0
    %962 = vmatprep.subr.bf16.mxu0 0
    %963 = vmatpush1.bf16.msra.mxu0 0
    %964 = vmatprep.subr.bf16.mxu0 0
    %965 = vmatpush1.bf16.msra.mxu0 0
    %966 = vmatprep.subr.bf16.mxu0 0
    %967 = vmatpush1.bf16.msra.mxu0 0
    %968 = vmatprep.subr.bf16.mxu0 0
    %969 = vmatpush1.bf16.msra.mxu0 0
    %970 = vmatprep.subr.bf16.mxu0 0
    %971 = vmatpush1.bf16.msra.mxu0 0
    %972 = vmatprep.mubr.bf16.mxu0 0
    %973 = vmatmul.mubr.bf16.gmra.mrb[0].mxu0 %v831
    %v974 = vpop.f32.mrb[0].mxu0
    %v975 = vadd.f32 %v853, %v974
    %v976 = vpop.f32.mrb[0].mxu0
    %v977 = vadd.f32 %v857, %v976
    %v978 = vpop.f32.mrb[0].mxu0
    %v979 = vpop.f32.mrb[0].mxu0
    %980 = vdwg.mxu0
    %v981 = vmul.f32 %v977, 0.5
    %v982 = vmul.f32 %v981, 1.442695
    %v983 = vpow.pop %v982
    %v984 = vld [vmem:[%s9] sm:$0xff]
    %v985 = vmul.f32 %v983, %v984
    %v986 = vadd.f32 %v975, %v985
    %v987 = vpack.c.bf16 %v986, %v986
    %v988 = vld [vmem:[#allocation10] sm:$0xf]
    %v989 = vld [vmem:[#allocation10 + $0x4] sm:$0xf]
    %v990 = vld [vmem:[#allocation10 + $0x8] sm:$0xf]
    %v991 = vld [vmem:[#allocation10 + $0xc] sm:$0xf]
    %v992 = vld [vmem:[#allocation10 + $0x10] sm:$0xf]
    %v993 = vld [vmem:[#allocation10 + $0x14] sm:$0xf]
    %v994 = vld [vmem:[#allocation10 + $0x18] sm:$0xf]
    %v995 = vld [vmem:[#allocation10 + $0x1c] sm:$0xf]
    %v996 = vld [vmem:[#allocation10 + $0x20] sm:$0xf]
    %v997 = vld [vmem:[#allocation10 + $0x24] sm:$0xf]
    %v998 = vld [vmem:[#allocation10 + $0x28] sm:$0xf]
    %v999 = vld [vmem:[#allocation10 + $0x2c] sm:$0xf]
    %v1000 = vld [vmem:[#allocation10 + $0x30] sm:$0xf]
    %v1001 = vld [vmem:[#allocation10 + $0x34] sm:$0xf]
    %v1002 = vld [vmem:[#allocation10 + $0x38] sm:$0xf]
    %v1003 = vld [vmem:[#allocation10 + $0x3c] sm:$0xf]
    %v1004 = vld [vmem:[%s6] sm:$0x1]
    %v1006 = vlaneseq
    %v1007 = vshrl.u32 %v1006, 7
    %v1008 = vsub.s32 0, %v1007
    %v1009 = vrot.slane %v1004, %v1008
    %v1027 = vunpack.c.l.b16 %v988
    %v1028 = vunpack.c.l.b16 %v989
    %v1029 = vunpack.c.l.b16 %v990
    %v1030 = vunpack.c.l.b16 %v991
    %v1031 = vunpack.c.l.b16 %v992
    %v1032 = vunpack.c.l.b16 %v993
    %v1033 = vunpack.c.l.b16 %v994
    %v1034 = vunpack.c.l.b16 %v995
    %v1035 = vunpack.c.l.b16 %v996
    %v1036 = vunpack.c.l.b16 %v997
    %v1037 = vunpack.c.l.b16 %v998
    %v1038 = vunpack.c.l.b16 %v999
    %v1039 = vunpack.c.l.b16 %v1000
    %v1040 = vunpack.c.l.b16 %v1001
    %v1041 = vunpack.c.l.b16 %v1002
    %v1042 = vunpack.c.l.b16 %v1003
    %v1043 = vpack.c.b16 %v1028, %v1027
    %v1044 = vpack.c.b16 %v1030, %v1029
    %v1045 = vpack.c.b16 %v1032, %v1031
    %v1046 = vpack.c.b16 %v1034, %v1033
    %v1047 = vpack.c.b16 %v1036, %v1035
    %v1048 = vpack.c.b16 %v1038, %v1037
    %v1049 = vpack.c.b16 %v1040, %v1039
    %v1050 = vpack.c.b16 %v1042, %v1041
    %1059 = vmatprep.subr.bf16.mxu0 0
    %1060 = vmatpush1.bf16.msra.mxu0 %v1043
    %1061 = vmatprep.subr.bf16.mxu0 0
    %1062 = vmatpush1.bf16.msra.mxu0 %v1044
    %1063 = vmatprep.subr.bf16.mxu0 0
    %1064 = vmatpush1.bf16.msra.mxu0 %v1045
    %1065 = vmatprep.subr.bf16.mxu0 0
    %1066 = vmatpush1.bf16.msra.mxu0 %v1046
    %1067 = vmatprep.subr.bf16.mxu0 0
    %1068 = vmatpush1.bf16.msra.mxu0 %v1047
    %1069 = vmatprep.subr.bf16.mxu0 0
    %1070 = vmatpush1.bf16.msra.mxu0 %v1048
    %1071 = vmatprep.subr.bf16.mxu0 0
    %1072 = vmatpush1.bf16.msra.mxu0 %v1049
    %1073 = vmatprep.subr.bf16.mxu0 0
    %1074 = vmatpush1.bf16.msra.mxu0 %v1050
    %1075 = vmatprep.subr.bf16.mxu0 0
    %1076 = vmatpush1.bf16.msra.mxu0 0
    %1077 = vmatprep.subr.bf16.mxu0 0
    %1078 = vmatpush1.bf16.msra.mxu0 0
    %1079 = vmatprep.subr.bf16.mxu0 0
    %1080 = vmatpush1.bf16.msra.mxu0 0
    %1081 = vmatprep.subr.bf16.mxu0 0
    %1082 = vmatpush1.bf16.msra.mxu0 0
    %1083 = vmatprep.subr.bf16.mxu0 0
    %1084 = vmatpush1.bf16.msra.mxu0 0
    %1085 = vmatprep.subr.bf16.mxu0 0
    %1086 = vmatpush1.bf16.msra.mxu0 0
    %1087 = vmatprep.subr.bf16.mxu0 0
    %1088 = vmatpush1.bf16.msra.mxu0 0
    %1089 = vmatprep.subr.bf16.mxu0 0
    %1090 = vmatpush1.bf16.msra.mxu0 0
    %1091 = vmatprep.mubr.bf16.mxu0 0
    %1092 = vmatmul.mubr.bf16.gmra.mrb[0].mxu0 %v987
    %v1093 = vpop.f32.mrb[0].mxu0
    %v1094 = vadd.f32 %v1009, %v1093
    %v1095 = vpop.f32.mrb[0].mxu0
    %v1096 = vpop.f32.mrb[0].mxu0
    %v1097 = vpop.f32.mrb[0].mxu0
    %1098 = vdwg.mxu0
    %v1099 = vmax.f32 %v1094, 0.0
    %v1100 = vpack.c.bf16 %v1099, %v1099
    %v1101 = vld [vmem:[#allocation11] sm:$0xff]
    %v1102 = vld [vmem:[#allocation11 + $0x8] sm:$0xff]
    %v1103 = vld [vmem:[#allocation11 + $0x10] sm:$0xff]
    %v1104 = vld [vmem:[#allocation11 + $0x18] sm:$0xff]
    %v1105 = vld [vmem:[#allocation11 + $0x20] sm:$0xff]
    %v1106 = vld [vmem:[#allocation11 + $0x28] sm:$0xff]
    %v1107 = vld [vmem:[#allocation11 + $0x30] sm:$0xff]
    %v1108 = vld [vmem:[#allocation11 + $0x38] sm:$0xff]
    %v1109 = vld [vmem:[#allocation11 + $0x40] sm:$0xff]
    %v1110 = vld [vmem:[#allocation11 + $0x48] sm:$0xff]
    %v1111 = vld [vmem:[#allocation11 + $0x50] sm:$0xff]
    %v1112 = vld [vmem:[#allocation11 + $0x58] sm:$0xff]
    %v1113 = vld [vmem:[#allocation11 + $0x60] sm:$0xff]
    %v1114 = vld [vmem:[#allocation11 + $0x68] sm:$0xff]
    %v1115 = vld [vmem:[#allocation11 + $0x70] sm:$0xff]
    %v1116 = vld [vmem:[#allocation11 + $0x78] sm:$0xff]
    %v1117 = vld [vmem:[#allocation11 + $0x80] sm:$0xff]
    %v1118 = vld [vmem:[#allocation11 + $0x88] sm:$0xff]
    %v1119 = vld [vmem:[#allocation11 + $0x90] sm:$0xff]
    %v1120 = vld [vmem:[#allocation11 + $0x98] sm:$0xff]
    %v1121 = vld [vmem:[#allocation11 + $0xa0] sm:$0xff]
    %v1122 = vld [vmem:[#allocation11 + $0xa8] sm:$0xff]
    %v1123 = vld [vmem:[#allocation11 + $0xb0] sm:$0xff]
    %v1124 = vld [vmem:[#allocation11 + $0xb8] sm:$0xff]
    %v1125 = vld [vmem:[#allocation11 + $0xc0] sm:$0xff]
    %v1126 = vld [vmem:[#allocation11 + $0xc8] sm:$0xff]
    %v1127 = vld [vmem:[#allocation11 + $0xd0] sm:$0xff]
    %v1128 = vld [vmem:[#allocation11 + $0xd8] sm:$0xff]
    %v1129 = vld [vmem:[#allocation11 + $0xe0] sm:$0xff]
    %v1130 = vld [vmem:[#allocation11 + $0xe8] sm:$0xff]
    %v1131 = vld [vmem:[#allocation11 + $0xf0] sm:$0xff]
    %v1132 = vld [vmem:[#allocation11 + $0xf8] sm:$0xff]
    %v1133 = vld [vmem:[#allocation11 + $0x100] sm:$0xff]
    %v1134 = vld [vmem:[#allocation11 + $0x108] sm:$0xff]
    %v1135 = vld [vmem:[#allocation11 + $0x110] sm:$0xff]
    %v1136 = vld [vmem:[#allocation11 + $0x118] sm:$0xff]
    %v1137 = vld [vmem:[#allocation11 + $0x120] sm:$0xff]
    %v1138 = vld [vmem:[#allocation11 + $0x128] sm:$0xff]
    %v1139 = vld [vmem:[#allocation11 + $0x130] sm:$0xff]
    %v1140 = vld [vmem:[#allocation11 + $0x138] sm:$0xff]
    %v1141 = vld [vmem:[#allocation11 + $0x140] sm:$0xff]
    %v1142 = vld [vmem:[#allocation11 + $0x148] sm:$0xff]
    %v1143 = vld [vmem:[#allocation11 + $0x150] sm:$0xff]
    %v1144 = vld [vmem:[#allocation11 + $0x158] sm:$0xff]
    %v1145 = vld [vmem:[#allocation11 + $0x160] sm:$0xff]
    %v1146 = vld [vmem:[#allocation11 + $0x168] sm:$0xff]
    %v1147 = vld [vmem:[#allocation11 + $0x170] sm:$0xff]
    %v1148 = vld [vmem:[#allocation11 + $0x178] sm:$0xff]
    %v1149 = vld [vmem:[#allocation11 + $0x180] sm:$0xff]
    %v1150 = vld [vmem:[#allocation11 + $0x188] sm:$0xff]
    %v1151 = vld [vmem:[#allocation11 + $0x190] sm:$0xff]
    %v1152 = vld [vmem:[#allocation11 + $0x198] sm:$0xff]
    %v1153 = vld [vmem:[#allocation11 + $0x1a0] sm:$0xff]
    %v1154 = vld [vmem:[#allocation11 + $0x1a8] sm:$0xff]
    %v1155 = vld [vmem:[#allocation11 + $0x1b0] sm:$0xff]
    %v1156 = vld [vmem:[#allocation11 + $0x1b8] sm:$0xff]
    %v1157 = vld [vmem:[#allocation11 + $0x1c0] sm:$0xff]
    %v1158 = vld [vmem:[#allocation11 + $0x1c8] sm:$0xff]
    %v1159 = vld [vmem:[#allocation11 + $0x1d0] sm:$0xff]
    %v1160 = vld [vmem:[#allocation11 + $0x1d8] sm:$0xff]
    %v1161 = vld [vmem:[#allocation11 + $0x1e0] sm:$0xff]
    %v1162 = vld [vmem:[#allocation11 + $0x1e8] sm:$0xff]
    %v1163 = vld [vmem:[#allocation11 + $0x1f0] sm:$0xff]
    %v1164 = vld [vmem:[#allocation11 + $0x1f8] sm:$0xff]
    %v1165 = vld [vmem:[%s8] sm:$0xff]
    %v1167 = vlaneseq
    %v1168 = vshrl.u32 %v1167, 7
    %v1169 = vsub.s32 0, %v1168
    %v1170 = vrot.slane %v1165, %v1169
    %v1171 = vlaneseq
    %v1172 = vshrl.u32 %v1171, 7
    %v1173 = vsub.s32 1, %v1172
    %v1174 = vrot.slane %v1165, %v1173
    %v1175 = vlaneseq
    %v1176 = vshrl.u32 %v1175, 7
    %v1177 = vsub.s32 2, %v1176
    %v1178 = vrot.slane %v1165, %v1177
    %v1179 = vlaneseq
    %v1180 = vshrl.u32 %v1179, 7
    %v1181 = vsub.s32 3, %v1180
    %v1182 = vrot.slane %v1165, %v1181
    %v1183 = vlaneseq
    %v1184 = vshrl.u32 %v1183, 7
    %v1185 = vsub.s32 4, %v1184
    %v1186 = vrot.slane %v1165, %v1185
    %v1187 = vlaneseq
    %v1188 = vshrl.u32 %v1187, 7
    %v1189 = vsub.s32 5, %v1188
    %v1190 = vrot.slane %v1165, %v1189
    %v1191 = vlaneseq
    %v1192 = vshrl.u32 %v1191, 7
    %v1193 = vsub.s32 6, %v1192
    %v1194 = vrot.slane %v1165, %v1193
    %v1195 = vlaneseq
    %v1196 = vshrl.u32 %v1195, 7
    %v1197 = vsub.s32 7, %v1196
    %v1198 = vrot.slane %v1165, %v1197
    %v1271 = vunpack.c.l.b16 %v1101
    %v1272 = vunpack.c.h.b16 %v1101
    %v1273 = vunpack.c.l.b16 %v1102
    %v1274 = vunpack.c.h.b16 %v1102
    %v1275 = vunpack.c.l.b16 %v1103
    %v1276 = vunpack.c.h.b16 %v1103
    %v1277 = vunpack.c.l.b16 %v1104
    %v1278 = vunpack.c.h.b16 %v1104
    %v1279 = vunpack.c.l.b16 %v1105
    %v1280 = vunpack.c.h.b16 %v1105
    %v1281 = vunpack.c.l.b16 %v1106
    %v1282 = vunpack.c.h.b16 %v1106
    %v1283 = vunpack.c.l.b16 %v1107
    %v1284 = vunpack.c.h.b16 %v1107
    %v1285 = vunpack.c.l.b16 %v1108
    %v1286 = vunpack.c.h.b16 %v1108
    %v1287 = vunpack.c.l.b16 %v1109
    %v1288 = vunpack.c.h.b16 %v1109
    %v1289 = vunpack.c.l.b16 %v1110
    %v1290 = vunpack.c.h.b16 %v1110
    %v1291 = vunpack.c.l.b16 %v1111
    %v1292 = vunpack.c.h.b16 %v1111
    %v1293 = vunpack.c.l.b16 %v1112
    %v1294 = vunpack.c.h.b16 %v1112
    %v1295 = vunpack.c.l.b16 %v1113
    %v1296 = vunpack.c.h.b16 %v1113
    %v1297 = vunpack.c.l.b16 %v1114
    %v1298 = vunpack.c.h.b16 %v1114
    %v1299 = vunpack.c.l.b16 %v1115
    %v1300 = vunpack.c.h.b16 %v1115
    %v1301 = vunpack.c.l.b16 %v1116
    %v1302 = vunpack.c.h.b16 %v1116
    %v1303 = vunpack.c.l.b16 %v1117
    %v1304 = vunpack.c.h.b16 %v1117
    %v1305 = vunpack.c.l.b16 %v1118
    %v1306 = vunpack.c.h.b16 %v1118
    %v1307 = vunpack.c.l.b16 %v1119
    %v1308 = vunpack.c.h.b16 %v1119
    %v1309 = vunpack.c.l.b16 %v1120
    %v1310 = vunpack.c.h.b16 %v1120
    %v1311 = vunpack.c.l.b16 %v1121
    %v1312 = vunpack.c.h.b16 %v1121
    %v1313 = vunpack.c.l.b16 %v1122
    %v1314 = vunpack.c.h.b16 %v1122
    %v1315 = vunpack.c.l.b16 %v1123
    %v1316 = vunpack.c.h.b16 %v1123
    %v1317 = vunpack.c.l.b16 %v1124
    %v1318 = vunpack.c.h.b16 %v1124
    %v1319 = vunpack.c.l.b16 %v1125
    %v1320 = vunpack.c.h.b16 %v1125
    %v1321 = vunpack.c.l.b16 %v1126
    %v1322 = vunpack.c.h.b16 %v1126
    %v1323 = vunpack.c.l.b16 %v1127
    %v1324 = vunpack.c.h.b16 %v1127
    %v1325 = vunpack.c.l.b16 %v1128
    %v1326 = vunpack.c.h.b16 %v1128
    %v1327 = vunpack.c.l.b16 %v1129
    %v1328 = vunpack.c.h.b16 %v1129
    %v1329 = vunpack.c.l.b16 %v1130
    %v1330 = vunpack.c.h.b16 %v1130
    %v1331 = vunpack.c.l.b16 %v1131
    %v1332 = vunpack.c.h.b16 %v1131
    %v1333 = vunpack.c.l.b16 %v1132
    %v1334 = vunpack.c.h.b16 %v1132
    %v1335 = vunpack.c.l.b16 %v1133
    %v1336 = vunpack.c.h.b16 %v1133
    %v1337 = vunpack.c.l.b16 %v1134
    %v1338 = vunpack.c.h.b16 %v1134
    %v1339 = vunpack.c.l.b16 %v1135
    %v1340 = vunpack.c.h.b16 %v1135
    %v1341 = vunpack.c.l.b16 %v1136
    %v1342 = vunpack.c.h.b16 %v1136
    %v1343 = vunpack.c.l.b16 %v1137
    %v1344 = vunpack.c.h.b16 %v1137
    %v1345 = vunpack.c.l.b16 %v1138
    %v1346 = vunpack.c.h.b16 %v1138
    %v1347 = vunpack.c.l.b16 %v1139
    %v1348 = vunpack.c.h.b16 %v1139
    %v1349 = vunpack.c.l.b16 %v1140
    %v1350 = vunpack.c.h.b16 %v1140
    %v1351 = vunpack.c.l.b16 %v1141
    %v1352 = vunpack.c.h.b16 %v1141
    %v1353 = vunpack.c.l.b16 %v1142
    %v1354 = vunpack.c.h.b16 %v1142
    %v1355 = vunpack.c.l.b16 %v1143
    %v1356 = vunpack.c.h.b16 %v1143
    %v1357 = vunpack.c.l.b16 %v1144
    %v1358 = vunpack.c.h.b16 %v1144
    %v1359 = vunpack.c.l.b16 %v1145
    %v1360 = vunpack.c.h.b16 %v1145
    %v1361 = vunpack.c.l.b16 %v1146
    %v1362 = vunpack.c.h.b16 %v1146
    %v1363 = vunpack.c.l.b16 %v1147
    %v1364 = vunpack.c.h.b16 %v1147
    %v1365 = vunpack.c.l.b16 %v1148
    %v1366 = vunpack.c.h.b16 %v1148
    %v1367 = vunpack.c.l.b16 %v1149
    %v1368 = vunpack.c.h.b16 %v1149
    %v1369 = vunpack.c.l.b16 %v1150
    %v1370 = vunpack.c.h.b16 %v1150
    %v1371 = vunpack.c.l.b16 %v1151
    %v1372 = vunpack.c.h.b16 %v1151
    %v1373 = vunpack.c.l.b16 %v1152
    %v1374 = vunpack.c.h.b16 %v1152
    %v1375 = vunpack.c.l.b16 %v1153
    %v1376 = vunpack.c.h.b16 %v1153
    %v1377 = vunpack.c.l.b16 %v1154
    %v1378 = vunpack.c.h.b16 %v1154
    %v1379 = vunpack.c.l.b16 %v1155
    %v1380 = vunpack.c.h.b16 %v1155
    %v1381 = vunpack.c.l.b16 %v1156
    %v1382 = vunpack.c.h.b16 %v1156
    %v1383 = vunpack.c.l.b16 %v1157
    %v1384 = vunpack.c.h.b16 %v1157
    %v1385 = vunpack.c.l.b16 %v1158
    %v1386 = vunpack.c.h.b16 %v1158
    %v1387 = vunpack.c.l.b16 %v1159
    %v1388 = vunpack.c.h.b16 %v1159
    %v1389 = vunpack.c.l.b16 %v1160
    %v1390 = vunpack.c.h.b16 %v1160
    %v1391 = vunpack.c.l.b16 %v1161
    %v1392 = vunpack.c.h.b16 %v1161
    %v1393 = vunpack.c.l.b16 %v1162
    %v1394 = vunpack.c.h.b16 %v1162
    %v1395 = vunpack.c.l.b16 %v1163
    %v1396 = vunpack.c.h.b16 %v1163
    %v1397 = vunpack.c.l.b16 %v1164
    %v1398 = vunpack.c.h.b16 %v1164
    %v1399 = vpack.c.b16 %v1279, %v1271
    %v1400 = vpack.c.b16 %v1280, %v1272
    %v1401 = vpack.c.b16 %v1281, %v1273
    %v1402 = vpack.c.b16 %v1282, %v1274
    %v1403 = vpack.c.b16 %v1283, %v1275
    %v1404 = vpack.c.b16 %v1284, %v1276
    %v1405 = vpack.c.b16 %v1285, %v1277
    %v1406 = vpack.c.b16 %v1286, %v1278
    %v1407 = vpack.c.b16 %v1295, %v1287
    %v1408 = vpack.c.b16 %v1296, %v1288
    %v1409 = vpack.c.b16 %v1297, %v1289
    %v1410 = vpack.c.b16 %v1298, %v1290
    %v1411 = vpack.c.b16 %v1299, %v1291
    %v1412 = vpack.c.b16 %v1300, %v1292
    %v1413 = vpack.c.b16 %v1301, %v1293
    %v1414 = vpack.c.b16 %v1302, %v1294
    %v1415 = vpack.c.b16 %v1311, %v1303
    %v1416 = vpack.c.b16 %v1312, %v1304
    %v1417 = vpack.c.b16 %v1313, %v1305
    %v1418 = vpack.c.b16 %v1314, %v1306
    %v1419 = vpack.c.b16 %v1315, %v1307
    %v1420 = vpack.c.b16 %v1316, %v1308
    %v1421 = vpack.c.b16 %v1317, %v1309
    %v1422 = vpack.c.b16 %v1318, %v1310
    %v1423 = vpack.c.b16 %v1327, %v1319
    %v1424 = vpack.c.b16 %v1328, %v1320
    %v1425 = vpack.c.b16 %v1329, %v1321
    %v1426 = vpack.c.b16 %v1330, %v1322
    %v1427 = vpack.c.b16 %v1331, %v1323
    %v1428 = vpack.c.b16 %v1332, %v1324
    %v1429 = vpack.c.b16 %v1333, %v1325
    %v1430 = vpack.c.b16 %v1334, %v1326
    %v1431 = vpack.c.b16 %v1343, %v1335
    %v1432 = vpack.c.b16 %v1344, %v1336
    %v1433 = vpack.c.b16 %v1345, %v1337
    %v1434 = vpack.c.b16 %v1346, %v1338
    %v1435 = vpack.c.b16 %v1347, %v1339
    %v1436 = vpack.c.b16 %v1348, %v1340
    %v1437 = vpack.c.b16 %v1349, %v1341
    %v1438 = vpack.c.b16 %v1350, %v1342
    %v1439 = vpack.c.b16 %v1359, %v1351
    %v1440 = vpack.c.b16 %v1360, %v1352
    %v1441 = vpack.c.b16 %v1361, %v1353
    %v1442 = vpack.c.b16 %v1362, %v1354
    %v1443 = vpack.c.b16 %v1363, %v1355
    %v1444 = vpack.c.b16 %v1364, %v1356
    %v1445 = vpack.c.b16 %v1365, %v1357
    %v1446 = vpack.c.b16 %v1366, %v1358
    %v1447 = vpack.c.b16 %v1375, %v1367
    %v1448 = vpack.c.b16 %v1376, %v1368
    %v1449 = vpack.c.b16 %v1377, %v1369
    %v1450 = vpack.c.b16 %v1378, %v1370
    %v1451 = vpack.c.b16 %v1379, %v1371
    %v1452 = vpack.c.b16 %v1380, %v1372
    %v1453 = vpack.c.b16 %v1381, %v1373
    %v1454 = vpack.c.b16 %v1382, %v1374
    %v1455 = vpack.c.b16 %v1391, %v1383
    %v1456 = vpack.c.b16 %v1392, %v1384
    %v1457 = vpack.c.b16 %v1393, %v1385
    %v1458 = vpack.c.b16 %v1394, %v1386
    %v1459 = vpack.c.b16 %v1395, %v1387
    %v1460 = vpack.c.b16 %v1396, %v1388
    %v1461 = vpack.c.b16 %v1397, %v1389
    %v1462 = vpack.c.b16 %v1398, %v1390
    %1527 = vmatprep.subr.bf16.mxu0 %v1400
    %1528 = vmatpush1.bf16.msra.mxu0 %v1399
    %1529 = vmatprep.subr.bf16.mxu0 %v1408
    %1530 = vmatpush1.bf16.msra.mxu0 %v1407
    %1531 = vmatprep.subr.bf16.mxu0 %v1416
    %1532 = vmatpush1.bf16.msra.mxu0 %v1415
    %1533 = vmatprep.subr.bf16.mxu0 %v1424
    %1534 = vmatpush1.bf16.msra.mxu0 %v1423
    %1535 = vmatprep.subr.bf16.mxu0 %v1432
    %1536 = vmatpush1.bf16.msra.mxu0 %v1431
    %1537 = vmatprep.subr.bf16.mxu0 %v1440
    %1538 = vmatpush1.bf16.msra.mxu0 %v1439
    %1539 = vmatprep.subr.bf16.mxu0 %v1448
    %1540 = vmatpush1.bf16.msra.mxu0 %v1447
    %1541 = vmatprep.subr.bf16.mxu0 %v1456
    %1542 = vmatpush1.bf16.msra.mxu0 %v1455
    %1543 = vmatprep.subr.bf16.mxu0 0
    %1544 = vmatpush1.bf16.msra.mxu0 0
    %1545 = vmatprep.subr.bf16.mxu0 0
    %1546 = vmatpush1.bf16.msra.mxu0 0
    %1547 = vmatprep.subr.bf16.mxu0 0
    %1548 = vmatpush1.bf16.msra.mxu0 0
    %1549 = vmatprep.subr.bf16.mxu0 0
    %1550 = vmatpush1.bf16.msra.mxu0 0
    %1551 = vmatprep.subr.bf16.mxu0 0
    %1552 = vmatpush1.bf16.msra.mxu0 0
    %1553 = vmatprep.subr.bf16.mxu0 0
    %1554 = vmatpush1.bf16.msra.mxu0 0
    %1555 = vmatprep.subr.bf16.mxu0 0
    %1556 = vmatpush1.bf16.msra.mxu0 0
    %1557 = vmatprep.subr.bf16.mxu0 0
    %1558 = vmatpush1.bf16.msra.mxu0 0
    %1559 = vmatprep.mubr.bf16.mxu0 0
    %1560 = vmatmul.mubr.bf16.gmra.mrb[0].mxu0 %v1100
    %v1561 = vpop.f32.mrb[0].mxu0
    %v1562 = vadd.f32 %v1170, %v1561
    %v1563 = vpop.f32.mrb[0].mxu0
    %v1564 = vadd.f32 %v1174, %v1563
    %v1565 = vpop.f32.mrb[0].mxu0
    %v1566 = vpop.f32.mrb[0].mxu0
    %1567 = vdwg.mxu0
    %1568 = vmatprep.subr.bf16.mxu0 %v1402
    %1569 = vmatpush1.bf16.msra.mxu0 %v1401
    %1570 = vmatprep.subr.bf16.mxu0 %v1410
    %1571 = vmatpush1.bf16.msra.mxu0 %v1409
    %1572 = vmatprep.subr.bf16.mxu0 %v1418
    %1573 = vmatpush1.bf16.msra.mxu0 %v1417
    %1574 = vmatprep.subr.bf16.mxu0 %v1426
    %1575 = vmatpush1.bf16.msra.mxu0 %v1425
    %1576 = vmatprep.subr.bf16.mxu0 %v1434
    %1577 = vmatpush1.bf16.msra.mxu0 %v1433
    %1578 = vmatprep.subr.bf16.mxu0 %v1442
    %1579 = vmatpush1.bf16.msra.mxu0 %v1441
    %1580 = vmatprep.subr.bf16.mxu0 %v1450
    %1581 = vmatpush1.bf16.msra.mxu0 %v1449
    %1582 = vmatprep.subr.bf16.mxu0 %v1458
    %1583 = vmatpush1.bf16.msra.mxu0 %v1457
    %1584 = vmatprep.subr.bf16.mxu0 0
    %1585 = vmatpush1.bf16.msra.mxu0 0
    %1586 = vmatprep.subr.bf16.mxu0 0
    %1587 = vmatpush1.bf16.msra.mxu0 0
    %1588 = vmatprep.subr.bf16.mxu0 0
    %1589 = vmatpush1.bf16.msra.mxu0 0
    %1590 = vmatprep.subr.bf16.mxu0 0
    %1591 = vmatpush1.bf16.msra.mxu0 0
    %1592 = vmatprep.subr.bf16.mxu0 0
    %1593 = vmatpush1.bf16.msra.mxu0 0
    %1594 = vmatprep.subr.bf16.mxu0 0
    %1595 = vmatpush1.bf16.msra.mxu0 0
    %1596 = vmatprep.subr.bf16.mxu0 0
    %1597 = vmatpush1.bf16.msra.mxu0 0
    %1598 = vmatprep.subr.bf16.mxu0 0
    %1599 = vmatpush1.bf16.msra.mxu0 0
    %1600 = vmatprep.mubr.bf16.mxu0 0
    %1601 = vmatmul.mubr.bf16.gmra.mrb[0].mxu0 %v1100
    %v1602 = vpop.f32.mrb[0].mxu0
    %v1603 = vadd.f32 %v1178, %v1602
    %v1604 = vpop.f32.mrb[0].mxu0
    %v1605 = vadd.f32 %v1182, %v1604
    %v1606 = vpop.f32.mrb[0].mxu0
    %v1607 = vpop.f32.mrb[0].mxu0
    %1608 = vdwg.mxu0
    %1609 = vmatprep.subr.bf16.mxu0 %v1404
    %1610 = vmatpush1.bf16.msra.mxu0 %v1403
    %1611 = vmatprep.subr.bf16.mxu0 %v1412
    %1612 = vmatpush1.bf16.msra.mxu0 %v1411
    %1613 = vmatprep.subr.bf16.mxu0 %v1420
    %1614 = vmatpush1.bf16.msra.mxu0 %v1419
    %1615 = vmatprep.subr.bf16.mxu0 %v1428
    %1616 = vmatpush1.bf16.msra.mxu0 %v1427
    %1617 = vmatprep.subr.bf16.mxu0 %v1436
    %1618 = vmatpush1.bf16.msra.mxu0 %v1435
    %1619 = vmatprep.subr.bf16.mxu0 %v1444
    %1620 = vmatpush1.bf16.msra.mxu0 %v1443
    %1621 = vmatprep.subr.bf16.mxu0 %v1452
    %1622 = vmatpush1.bf16.msra.mxu0 %v1451
    %1623 = vmatprep.subr.bf16.mxu0 %v1460
    %1624 = vmatpush1.bf16.msra.mxu0 %v1459
    %1625 = vmatprep.subr.bf16.mxu0 0
    %1626 = vmatpush1.bf16.msra.mxu0 0
    %1627 = vmatprep.subr.bf16.mxu0 0
    %1628 = vmatpush1.bf16.msra.mxu0 0
    %1629 = vmatprep.subr.bf16.mxu0 0
    %1630 = vmatpush1.bf16.msra.mxu0 0
    %1631 = vmatprep.subr.bf16.mxu0 0
    %1632 = vmatpush1.bf16.msra.mxu0 0
    %1633 = vmatprep.subr.bf16.mxu0 0
    %1634 = vmatpush1.bf16.msra.mxu0 0
    %1635 = vmatprep.subr.bf16.mxu0 0
    %1636 = vmatpush1.bf16.msra.mxu0 0
    %1637 = vmatprep.subr.bf16.mxu0 0
    %1638 = vmatpush1.bf16.msra.mxu0 0
    %1639 = vmatprep.subr.bf16.mxu0 0
    %1640 = vmatpush1.bf16.msra.mxu0 0
    %1641 = vmatprep.mubr.bf16.mxu0 0
    %1642 = vmatmul.mubr.bf16.gmra.mrb[0].mxu0 %v1100
    %v1643 = vpop.f32.mrb[0].mxu0
    %v1644 = vadd.f32 %v1186, %v1643
    %v1645 = vpop.f32.mrb[0].mxu0
    %v1646 = vadd.f32 %v1190, %v1645
    %v1647 = vpop.f32.mrb[0].mxu0
    %v1648 = vpop.f32.mrb[0].mxu0
    %1649 = vdwg.mxu0
    %1650 = vmatprep.subr.bf16.mxu0 %v1406
    %1651 = vmatpush1.bf16.msra.mxu0 %v1405
    %1652 = vmatprep.subr.bf16.mxu0 %v1414
    %1653 = vmatpush1.bf16.msra.mxu0 %v1413
    %1654 = vmatprep.subr.bf16.mxu0 %v1422
    %1655 = vmatpush1.bf16.msra.mxu0 %v1421
    %1656 = vmatprep.subr.bf16.mxu0 %v1430
    %1657 = vmatpush1.bf16.msra.mxu0 %v1429
    %1658 = vmatprep.subr.bf16.mxu0 %v1438
    %1659 = vmatpush1.bf16.msra.mxu0 %v1437
    %1660 = vmatprep.subr.bf16.mxu0 %v1446
    %1661 = vmatpush1.bf16.msra.mxu0 %v1445
    %1662 = vmatprep.subr.bf16.mxu0 %v1454
    %1663 = vmatpush1.bf16.msra.mxu0 %v1453
    %1664 = vmatprep.subr.bf16.mxu0 %v1462
    %1665 = vmatpush1.bf16.msra.mxu0 %v1461
    %1666 = vmatprep.subr.bf16.mxu0 0
    %1667 = vmatpush1.bf16.msra.mxu0 0
    %1668 = vmatprep.subr.bf16.mxu0 0
    %1669 = vmatpush1.bf16.msra.mxu0 0
    %1670 = vmatprep.subr.bf16.mxu0 0
    %1671 = vmatpush1.bf16.msra.mxu0 0
    %1672 = vmatprep.subr.bf16.mxu0 0
    %1673 = vmatpush1.bf16.msra.mxu0 0
    %1674 = vmatprep.subr.bf16.mxu0 0
    %1675 = vmatpush1.bf16.msra.mxu0 0
    %1676 = vmatprep.subr.bf16.mxu0 0
    %1677 = vmatpush1.bf16.msra.mxu0 0
    %1678 = vmatprep.subr.bf16.mxu0 0
    %1679 = vmatpush1.bf16.msra.mxu0 0
    %1680 = vmatprep.subr.bf16.mxu0 0
    %1681 = vmatpush1.bf16.msra.mxu0 0
    %1682 = vmatprep.mubr.bf16.mxu0 0
    %1683 = vmatmul.mubr.bf16.gmra.mrb[0].mxu0 %v1100
    %v1684 = vpop.f32.mrb[0].mxu0
    %v1685 = vadd.f32 %v1194, %v1684
    %v1686 = vpop.f32.mrb[0].mxu0
    %v1687 = vadd.f32 %v1198, %v1686
    %v1688 = vpop.f32.mrb[0].mxu0
    %v1689 = vpop.f32.mrb[0].mxu0
    %1690 = vdwg.mxu0
    %v1691 = vpack.c.bf16 %v1562, %v1562
    %v1692 = vpack.c.bf16 %v1564, %v1564
    %v1693 = vpack.c.bf16 %v1603, %v1603
    %v1694 = vpack.c.bf16 %v1605, %v1605
    %v1695 = vpack.c.bf16 %v1644, %v1644
    %v1696 = vpack.c.bf16 %v1646, %v1646
    %v1697 = vpack.c.bf16 %v1685, %v1685
    %v1698 = vpack.c.bf16 %v1687, %v1687
    %v1707 = vunpack.c.l.b16 %v1691
    %v1708 = vunpack.c.l.b16 %v1692
    %v1709 = vunpack.c.l.b16 %v1693
    %v1710 = vunpack.c.l.b16 %v1694
    %v1711 = vunpack.c.l.b16 %v1695
    %v1712 = vunpack.c.l.b16 %v1696
    %v1713 = vunpack.c.l.b16 %v1697
    %v1714 = vunpack.c.l.b16 %v1698
    %v1715 = vpack.c.b16 %v1708, %v1707
    %v1716 = vpack.c.b16 %v1710, %v1709
    %v1717 = vpack.c.b16 %v1712, %v1711
    %v1718 = vpack.c.b16 %v1714, %v1713
    %1723 = vst [vmem:[#allocation13] sm:$0xff] %v1715
    %1724 = vst [vmem:[#allocation13 + $0x8] sm:$0xff] %v1716
    %1725 = vst [vmem:[#allocation13 + $0x10] sm:$0xff] %v1717
    %1726 = vst [vmem:[#allocation13 + $0x18] sm:$0xff] %v1718
    %1727 = vst [vmem:[#allocation14] sm:$0xff] %v975
    %1728 = vst [vmem:[#allocation16] sm:$0xff] %v977
    // Predicated region
    $region66: #{tpu_custom_call.1} parent=1 // pred_check
      _
    $region67: #{tpu_custom_call.1} parent=1 // pred_check_branch
      %1730 = sbr.rel (0) target = $region69
    $region68: #{tpu_custom_call.1} parent=1 // pred_region
      %s1732 = ssub.s32 512, 512
      %1733 = vsyncadd [#allocation4], %s1732
      %s1735 = sshll.u32 [#allocation13], 4
      %s1736 = int_to_ptr.vmem [resolvable:$true] %s1735
      %1738 = dma.vmem_to_hbm [thread:$0]  %s1736, 512, %s10, [#allocation4]
    $region69: #{tpu_custom_call.1} parent=1 // pred_fallthru
      _
    // Predicated region
    $region70: #{tpu_custom_call.1} parent=1 // pred_check
      _
    $region71: #{tpu_custom_call.1} parent=1 // pred_check_branch
      %1740 = sbr.rel (0) target = $region73
    $region72: #{tpu_custom_call.1} parent=1 // pred_region
      %s1742 = ssub.s32 128, 128
      %1743 = vsyncadd [#allocation15], %s1742
      %s1745 = sshll.u32 [#allocation14], 4
      %s1746 = int_to_ptr.vmem [resolvable:$true] %s1745
      %1748 = dma.vmem_to_hbm [thread:$0]  %s1746, 128, %s11, [#allocation15]
    $region73: #{tpu_custom_call.1} parent=1 // pred_fallthru
      _
    // Predicated region
    $region74: #{tpu_custom_call.1} parent=1 // pred_check
      _
    $region75: #{tpu_custom_call.1} parent=1 // pred_check_branch
      %1750 = sbr.rel (0) target = $region77
    $region76: #{tpu_custom_call.1} parent=1 // pred_region
      %s1752 = ssub.s32 128, 128
      %1753 = vsyncadd [#allocation15], %s1752
      %s1755 = sshll.u32 [#allocation16], 4
      %s1756 = int_to_ptr.vmem [resolvable:$true] %s1755
      %1758 = dma.vmem_to_hbm [thread:$0]  %s1756, 128, %s12, [#allocation15]
    $region77: #{tpu_custom_call.1} parent=1 // pred_fallthru
      _
    // Predicated region
    $region78: #{tpu_custom_call.1} parent=1 // pred_check
      _
    $region79: #{tpu_custom_call.1} parent=1 // pred_check_branch
      %1760 = sbr.rel (0) target = $region81
    $region80: #{tpu_custom_call.1} parent=1 // pred_region
      %1761 = dma.done [#allocation4], 512
    $region81: #{tpu_custom_call.1} parent=1 // pred_fallthru
      _
    // Predicated region
    $region82: #{tpu_custom_call.1} parent=1 // pred_check
      _
    $region83: #{tpu_custom_call.1} parent=1 // pred_check_branch
      %1763 = sbr.rel (0) target = $region85
    $region84: #{tpu_custom_call.1} parent=1 // pred_region
      %1764 = dma.done [#allocation15], 128
    $region85: #{tpu_custom_call.1} parent=1 // pred_fallthru
      _
    // Predicated region
    $region86: #{tpu_custom_call.1} parent=1 // pred_check
      _
    $region87: #{tpu_custom_call.1} parent=1 // pred_check_branch
      %1766 = sbr.rel (0) target = $region89
    $region88: #{tpu_custom_call.1} parent=1 // pred_region
      %1767 = dma.done [#allocation15], 128
    $region89: #{tpu_custom_call.1} parent=1 // pred_fallthru
      _
    %1768 = vsyncpa [#allocation3], 1
    %1769 = vsyncpa [#allocation6], 1
    %1770 = vsyncpa [#allocation9], 1
    %1771 = vsyncpa [#allocation12], 1
    %1772 = vsyncpa [#allocation4], 1
    %1773 = vsyncpa [#allocation15], 1

</llo_original>
